<compile_context>
chip_gen: v6e
topology: v6e:2x2x1
jax: 0.10.0
libtpu: 0.0.40
codegen_flags: <defaults>
</compile_context>

<pallas_src>
import jax
import jax.numpy as jnp
from jax.experimental import pallas as pl
from jax.experimental.pallas import tpu as pltpu


def _make_driver_kernel(n_layers, seq_len, hidden_dim):
    H = hidden_dim
    bf16 = jnp.bfloat16
    f32 = jnp.float32

    def lstm_step(gates, c):
        # Gate columns are pre-permuted to [i, f, o, g]; the g columns'
        # weights/bias were pre-scaled by 2, so one sigmoid over all 4H lanes
        # covers every gate and tanh(g) = 2*sigmoid(2g) - 1.
        sig = jax.nn.sigmoid(gates)                     # (1, 4H) f32, one EUP push
        i_g = sig[:, 0 * H:1 * H]
        f_g = sig[:, 1 * H:2 * H]
        o_g = sig[:, 2 * H:3 * H]
        g_g = 2.0 * sig[:, 3 * H:4 * H] - 1.0           # tanh via scaled sigmoid (VPU)
        c_new = f_g * c + i_g * g_g
        h_new = o_g * jnp.tanh(c_new)                   # second EUP push (H lanes)
        return h_new, c_new

    def kernel(*refs):
        # refs = [x,
        #         w_ih0_T, w_hh0_T, bias0,
        #         (w_cat_l, bias_l) for l in 1..n_layers-1,
        #         w_out_T, b_out,
        #         out]
        x_ref = refs[0]                                  # (seq, in_dim)      bf16
        w_ih0 = refs[1][...]                             # (in_dim, 4H)       bf16
        w_hh0 = refs[2][...]                             # (H, 4H)            bf16
        bias0 = refs[3][...]                             # (1, 4H)            f32
        idx = 4
        upper = []                                       # layers 1..L-1
        for _ in range(1, n_layers):
            upper.append((refs[idx][...], refs[idx + 1][...]))   # (2H,4H) bf16, (1,4H) f32
            idx += 2
        w_out_T = refs[idx][...]                         # (H, out_dim)       bf16
        b_out = refs[idx + 1][...]                       # (1, out_dim)       f32
        out_ref = refs[idx + 2]                          # (seq, out_dim)     f32

        # ---- Hoisted layer-0 input projection (off the recurrence path) ----
        proj0 = jnp.dot(x_ref[...], w_ih0, preferred_element_type=f32) + bias0   # (seq, 4H)

        # Recurrent state, carried entirely in registers (no VMEM scratch).
        h_bf = [jnp.zeros((1, H), bf16) for _ in range(n_layers)]
        c = [jnp.zeros((1, H), f32) for _ in range(n_layers)]
        last_rows = []                                   # f32 h rows of the LAST layer

        for t in range(seq_len):
            # Layer 0: one MXU op on the critical path per step.
            gates = proj0[t:t + 1, :] + jnp.dot(h_bf[0], w_hh0,
                                                preferred_element_type=f32)
            h_f32, c[0] = lstm_step(gates, c[0])
            h_bf[0] = h_f32.astype(bf16)
            # Layers l>0: fused [w_ih; w_hh] matmul, depends only on the
            # layer-below h at this timestep and this layer's h at t-1, so
            # the per-layer serial chains wavefront-overlap.
            for l in range(1, n_layers):
                w_cat, b_l = upper[l - 1]
                xin = jnp.concatenate([h_bf[l - 1], h_bf[l]], axis=-1)   # (1, 2H) bf16
                gates = jnp.dot(xin, w_cat, preferred_element_type=f32) + b_l
                h_f32, c[l] = lstm_step(gates, c[l])
                h_bf[l] = h_f32.astype(bf16)
            last_rows.append(h_f32)                      # last layer's h at step t

        hiden = jnp.concatenate(last_rows, axis=0)       # (seq, H) f32
        out_ref[...] = (jnp.dot(hiden.astype(bf16), w_out_T,
                                preferred_element_type=f32) + b_out)     # (seq, out)

    return kernel


def _pack_gate_cols(w):
    """Permute last-axis gate blocks from PyTorch order [i, f, g, o] to
    [i, f, o, g] and pre-scale the g block by 2 (tanh -> scaled-sigmoid fold).
    Scaling by 2 is exact in bf16/f32, so it commutes with the later cast."""
    i, f, g, o = jnp.split(w, 4, axis=-1)
    return jnp.concatenate([i, f, o, 2.0 * g], axis=-1)


def driver_forward(state, params, *, n_layers, hidden_dim, output_dim):
    seq_len, batch, input_dim = state.shape
    H = hidden_dim
    bf16 = jnp.bfloat16
    f32 = jnp.float32
    kernel = _make_driver_kernel(n_layers, seq_len, H)

    # `lstm_out[:, -1]` only ever uses the LAST batch row, and LSTM batch rows
    # are independent -> run the kernel at batch=1 on that row only.
    x = state[:, -1, :].astype(bf16)                                     # (seq, in_dim)

    flat_inputs = [x]
    # Layer 0: keep w_ih / w_hh separate (input projection is hoisted).
    w_ih, w_hh, b_ih, b_hh = params["lstm"][0]
    flat_inputs.append(_pack_gate_cols(w_ih.T).astype(bf16))             # (in, 4H)
    flat_inputs.append(_pack_gate_cols(w_hh.T).astype(bf16))             # (H, 4H)
    flat_inputs.append(_pack_gate_cols((b_ih + b_hh).reshape(1, -1)).astype(f32))  # (1, 4H)
    # Layers 1..L-1: fused [w_ih_T; w_hh_T] -> one (2H, 4H) matmul per step.
    for l in range(1, n_layers):
        w_ih, w_hh, b_ih, b_hh = params["lstm"][l]
        w_cat = jnp.concatenate([w_ih.T, w_hh.T], axis=0)                # (2H, 4H)
        flat_inputs.append(_pack_gate_cols(w_cat).astype(bf16))
        flat_inputs.append(_pack_gate_cols((b_ih + b_hh).reshape(1, -1)).astype(f32))
    w_out, b_out = params["to_res"]
    flat_inputs.append(w_out.T.astype(bf16))                             # (H, out)
    flat_inputs.append(b_out.reshape(1, -1).astype(f32))                 # (1, out)

    vmem = pl.BlockSpec(memory_space=pltpu.MemorySpace.VMEM)
    return pl.pallas_call(
        kernel,
        out_shape=jax.ShapeDtypeStruct((seq_len, output_dim), jnp.float32),
        in_specs=[vmem] * len(flat_inputs),
        out_specs=vmem,
    )(*flat_inputs)


def init_params(key, input_dim, hidden_dim, n_layers, output_dim):
    """Deterministic init, mirroring nn.LSTM / nn.Linear parameter shapes."""
    k = 1.0 / jnp.sqrt(hidden_dim)
    params = {"lstm": []}
    for l in range(n_layers):
        in_dim_l = input_dim if l == 0 else hidden_dim
        key, k1, k2, k3, k4 = jax.random.split(key, 5)
        w_ih = jax.random.uniform(k1, (4 * hidden_dim, in_dim_l), jnp.float32, -k, k)
        w_hh = jax.random.uniform(k2, (4 * hidden_dim, hidden_dim), jnp.float32, -k, k)
        b_ih = jax.random.uniform(k3, (4 * hidden_dim,), jnp.float32, -k, k)
        b_hh = jax.random.uniform(k4, (4 * hidden_dim,), jnp.float32, -k, k)
        params["lstm"].append((w_ih, w_hh, b_ih, b_hh))
    key, k5, k6 = jax.random.split(key, 3)
    kl = 1.0 / jnp.sqrt(hidden_dim)
    w_out = jax.random.uniform(k5, (output_dim, hidden_dim), jnp.float32, -kl, kl)
    b_out = jax.random.uniform(k6, (output_dim,), jnp.float32, -kl, kl)
    params["to_res"] = (w_out, b_out)
    return params


def reference_forward(state, params, *, n_layers, hidden_dim, output_dim):
    """Pure-JAX reference with the same math as PyTorch nn.LSTM + nn.Linear
    (full batch; the `[:, -1]` slice happens at the end, as in the module).

    Matmul inputs are cast to bf16 (f32 accumulation) to mirror the kernel's
    MXU precision; all element-wise gate math stays f32.
    """
    seq_len, batch, _ = state.shape
    H = hidden_dim
    bf16 = jnp.bfloat16
    layer_in = state.astype(jnp.float32)
    for l in range(n_layers):
        w_ih, w_hh, b_ih, b_hh = params["lstm"][l]
        w_ih_T = w_ih.T.astype(bf16)
        w_hh_T = w_hh.T.astype(bf16)
        bias = (b_ih + b_hh).astype(jnp.float32)
        h = jnp.zeros((batch, H), jnp.float32)
        c = jnp.zeros((batch, H), jnp.float32)
        outs = []
        for t in range(seq_len):
            gates = (jnp.dot(layer_in[t].astype(bf16), w_ih_T,
                             preferred_element_type=jnp.float32)
                     + jnp.dot(h.astype(bf16), w_hh_T,
                               preferred_element_type=jnp.float32)
                     + bias)
            i = jax.nn.sigmoid(gates[:, 0 * H:1 * H])
            f = jax.nn.sigmoid(gates[:, 1 * H:2 * H])
            g = jnp.tanh(gates[:, 2 * H:3 * H])
            o = jax.nn.sigmoid(gates[:, 3 * H:4 * H])
            c = f * c + i * g
            h = o * jnp.tanh(c)
            outs.append(h)
        layer_in = jnp.stack(outs, axis=0)
    hiden = layer_in[:, -1]                 # last BATCH element, as in the module
    w_out, b_out = params["to_res"]
    return (jnp.dot(hiden.astype(bf16), w_out.T.astype(bf16),
                    preferred_element_type=jnp.float32) + b_out)


if __name__ == "__main__":
    # Small shapes consistent with the module's forward.
    seq_len, batch = 8, 2
    input_dim, hidden_dim, n_layers, output_dim = 4, 32, 2, 8

    key = jax.random.PRNGKey(0)
    key, kx = jax.random.split(key)
    state = jax.random.normal(kx, (seq_len, batch, input_dim), jnp.float32)
    params = init_params(key, input_dim, hidden_dim, n_layers, output_dim)

    out = driver_forward(state, params, n_layers=n_layers,
                         hidden_dim=hidden_dim, output_dim=output_dim)
    out = jax.block_until_ready(out)

    ref = reference_forward(state, params, n_layers=n_layers,
                            hidden_dim=hidden_dim, output_dim=output_dim)
    assert out.shape == (seq_len, output_dim)
    max_err = float(jnp.max(jnp.abs(out - ref)))
    assert jnp.allclose(out, ref, atol=5e-3, rtol=5e-3), max_err

    print("KERNEL_OK")
</pallas_src>

<mosaic_0001>
module attributes {stable_mosaic.version = 11 : i64} {
  func.func @kernel(%arg0: memref<8x4xbf16, #tpu.memory_space<vmem>>, %arg1: memref<4x128xbf16, #tpu.memory_space<vmem>>, %arg2: memref<32x128xbf16, #tpu.memory_space<vmem>>, %arg3: memref<1x128xf32, #tpu.memory_space<vmem>>, %arg4: memref<64x128xbf16, #tpu.memory_space<vmem>>, %arg5: memref<1x128xf32, #tpu.memory_space<vmem>>, %arg6: memref<32x8xbf16, #tpu.memory_space<vmem>>, %arg7: memref<1x8xf32, #tpu.memory_space<vmem>>, %arg8: memref<8x8xf32, #tpu.memory_space<vmem>>) attributes {dimension_semantics = [], scalar_prefetch = 0 : i64, scratch_operands = 0 : i64, tpu.core_type = #tpu.core_type<tc>} {
    %c0 = arith.constant 0 : index
    %c0_0 = arith.constant 0 : index
    %0 = vector.load %arg1[%c0, %c0_0] : memref<4x128xbf16, #tpu.memory_space<vmem>>, vector<4x128xbf16>
    %c0_1 = arith.constant 0 : index
    %c0_2 = arith.constant 0 : index
    %1 = vector.load %arg2[%c0_1, %c0_2] : memref<32x128xbf16, #tpu.memory_space<vmem>>, vector<32x128xbf16>
    %c0_3 = arith.constant 0 : index
    %c0_4 = arith.constant 0 : index
    %2 = vector.load %arg3[%c0_3, %c0_4] : memref<1x128xf32, #tpu.memory_space<vmem>>, vector<1x128xf32>
    %c0_5 = arith.constant 0 : index
    %c0_6 = arith.constant 0 : index
    %3 = vector.load %arg4[%c0_5, %c0_6] : memref<64x128xbf16, #tpu.memory_space<vmem>>, vector<64x128xbf16>
    %c0_7 = arith.constant 0 : index
    %c0_8 = arith.constant 0 : index
    %4 = vector.load %arg5[%c0_7, %c0_8] : memref<1x128xf32, #tpu.memory_space<vmem>>, vector<1x128xf32>
    %c0_9 = arith.constant 0 : index
    %c0_10 = arith.constant 0 : index
    %5 = vector.load %arg6[%c0_9, %c0_10] : memref<32x8xbf16, #tpu.memory_space<vmem>>, vector<32x8xbf16>
    %c0_11 = arith.constant 0 : index
    %c0_12 = arith.constant 0 : index
    %6 = vector.load %arg7[%c0_11, %c0_12] : memref<1x8xf32, #tpu.memory_space<vmem>>, vector<1x8xf32>
    %c0_13 = arith.constant 0 : index
    %c0_14 = arith.constant 0 : index
    %7 = vector.load %arg0[%c0_13, %c0_14] : memref<8x4xbf16, #tpu.memory_space<vmem>>, vector<8x4xbf16>
    %cst = arith.constant dense<0.000000e+00> : vector<8x128xf32>
    %8 = tpu.matmul %7, %0, %cst {dimension_numbers = #tpu.dot_dimension_numbers<[1], [0], [0], [1], [0, 0, 1, 1], [], []>} : vector<8x4xbf16>, vector<4x128xbf16>, vector<8x128xf32> -> vector<8x128xf32>
    %9 = vector.broadcast %2 : vector<1x128xf32> to vector<8x128xf32>
    %10 = arith.addf %8, %9 : vector<8x128xf32>
    %cst_15 = arith.constant 0.000000e+00 : bf16
    %11 = vector.broadcast %cst_15 : bf16 to vector<1x32xbf16>
    %cst_16 = arith.constant 0.000000e+00 : bf16
    %12 = vector.broadcast %cst_16 : bf16 to vector<1x32xbf16>
    %cst_17 = arith.constant 0.000000e+00 : f32
    %13 = vector.broadcast %cst_17 : f32 to vector<1x32xf32>
    %cst_18 = arith.constant 0.000000e+00 : f32
    %14 = vector.broadcast %cst_18 : f32 to vector<1x32xf32>
    %15 = vector.extract_strided_slice %10 {offsets = [0, 0], sizes = [1, 128], strides = [1, 1]} : vector<8x128xf32> to vector<1x128xf32>
    %cst_19 = arith.constant dense<0.000000e+00> : vector<1x128xf32>
    %16 = tpu.matmul %11, %1, %cst_19 {dimension_numbers = #tpu.dot_dimension_numbers<[1], [0], [0], [1], [0, 0, 1, 1], [], []>} : vector<1x32xbf16>, vector<32x128xbf16>, vector<1x128xf32> -> vector<1x128xf32>
    %17 = arith.addf %15, %16 : vector<1x128xf32>
    %18 = arith.negf %17 : vector<1x128xf32>
    %19 = math.exp %18 : vector<1x128xf32>
    %cst_20 = arith.constant 1.000000e+00 : f32
    %20 = vector.broadcast %cst_20 : f32 to vector<1x128xf32>
    %21 = arith.addf %20, %19 : vector<1x128xf32>
    %22 = arith.divf %20, %21 : vector<1x128xf32>
    %23 = vector.extract_strided_slice %22 {offsets = [0, 0], sizes = [1, 32], strides = [1, 1]} : vector<1x128xf32> to vector<1x32xf32>
    %24 = vector.extract_strided_slice %22 {offsets = [0, 32], sizes = [1, 32], strides = [1, 1]} : vector<1x128xf32> to vector<1x32xf32>
    %25 = vector.extract_strided_slice %22 {offsets = [0, 64], sizes = [1, 32], strides = [1, 1]} : vector<1x128xf32> to vector<1x32xf32>
    %26 = vector.extract_strided_slice %22 {offsets = [0, 96], sizes = [1, 32], strides = [1, 1]} : vector<1x128xf32> to vector<1x32xf32>
    %cst_21 = arith.constant 2.000000e+00 : f32
    %27 = vector.broadcast %cst_21 : f32 to vector<1x32xf32>
    %28 = arith.mulf %27, %26 : vector<1x32xf32>
    %cst_22 = arith.constant 1.000000e+00 : f32
    %29 = vector.broadcast %cst_22 : f32 to vector<1x32xf32>
    %30 = arith.subf %28, %29 : vector<1x32xf32>
    %31 = arith.mulf %24, %13 : vector<1x32xf32>
    %32 = arith.mulf %23, %30 : vector<1x32xf32>
    %33 = arith.addf %31, %32 : vector<1x32xf32>
    %34 = math.tanh %33 : vector<1x32xf32>
    %35 = arith.mulf %25, %34 : vector<1x32xf32>
    %36 = arith.truncf %35 : vector<1x32xf32> to vector<1x32xbf16>
    %37 = tpu.concatenate %36, %12 in 1 : vector<1x32xbf16>, vector<1x32xbf16> -> vector<1x64xbf16>
    %cst_23 = arith.constant dense<0.000000e+00> : vector<1x128xf32>
    %38 = tpu.matmul %37, %3, %cst_23 {dimension_numbers = #tpu.dot_dimension_numbers<[1], [0], [0], [1], [0, 0, 1, 1], [], []>} : vector<1x64xbf16>, vector<64x128xbf16>, vector<1x128xf32> -> vector<1x128xf32>
    %39 = arith.addf %38, %4 : vector<1x128xf32>
    %40 = arith.negf %39 : vector<1x128xf32>
    %41 = math.exp %40 : vector<1x128xf32>
    %cst_24 = arith.constant 1.000000e+00 : f32
    %42 = vector.broadcast %cst_24 : f32 to vector<1x128xf32>
    %43 = arith.addf %42, %41 : vector<1x128xf32>
    %44 = arith.divf %42, %43 : vector<1x128xf32>
    %45 = vector.extract_strided_slice %44 {offsets = [0, 0], sizes = [1, 32], strides = [1, 1]} : vector<1x128xf32> to vector<1x32xf32>
    %46 = vector.extract_strided_slice %44 {offsets = [0, 32], sizes = [1, 32], strides = [1, 1]} : vector<1x128xf32> to vector<1x32xf32>
    %47 = vector.extract_strided_slice %44 {offsets = [0, 64], sizes = [1, 32], strides = [1, 1]} : vector<1x128xf32> to vector<1x32xf32>
    %48 = vector.extract_strided_slice %44 {offsets = [0, 96], sizes = [1, 32], strides = [1, 1]} : vector<1x128xf32> to vector<1x32xf32>
    %cst_25 = arith.constant 2.000000e+00 : f32
    %49 = vector.broadcast %cst_25 : f32 to vector<1x32xf32>
    %50 = arith.mulf %49, %48 : vector<1x32xf32>
    %cst_26 = arith.constant 1.000000e+00 : f32
    %51 = vector.broadcast %cst_26 : f32 to vector<1x32xf32>
    %52 = arith.subf %50, %51 : vector<1x32xf32>
    %53 = arith.mulf %46, %14 : vector<1x32xf32>
    %54 = arith.mulf %45, %52 : vector<1x32xf32>
    %55 = arith.addf %53, %54 : vector<1x32xf32>
    %56 = math.tanh %55 : vector<1x32xf32>
    %57 = arith.mulf %47, %56 : vector<1x32xf32>
    %58 = arith.truncf %57 : vector<1x32xf32> to vector<1x32xbf16>
    %59 = vector.extract_strided_slice %10 {offsets = [1, 0], sizes = [1, 128], strides = [1, 1]} : vector<8x128xf32> to vector<1x128xf32>
    %cst_27 = arith.constant dense<0.000000e+00> : vector<1x128xf32>
    %60 = tpu.matmul %36, %1, %cst_27 {dimension_numbers = #tpu.dot_dimension_numbers<[1], [0], [0], [1], [0, 0, 1, 1], [], []>} : vector<1x32xbf16>, vector<32x128xbf16>, vector<1x128xf32> -> vector<1x128xf32>
    %61 = arith.addf %59, %60 : vector<1x128xf32>
    %62 = arith.negf %61 : vector<1x128xf32>
    %63 = math.exp %62 : vector<1x128xf32>
    %cst_28 = arith.constant 1.000000e+00 : f32
    %64 = vector.broadcast %cst_28 : f32 to vector<1x128xf32>
    %65 = arith.addf %64, %63 : vector<1x128xf32>
    %66 = arith.divf %64, %65 : vector<1x128xf32>
    %67 = vector.extract_strided_slice %66 {offsets = [0, 0], sizes = [1, 32], strides = [1, 1]} : vector<1x128xf32> to vector<1x32xf32>
    %68 = vector.extract_strided_slice %66 {offsets = [0, 32], sizes = [1, 32], strides = [1, 1]} : vector<1x128xf32> to vector<1x32xf32>
    %69 = vector.extract_strided_slice %66 {offsets = [0, 64], sizes = [1, 32], strides = [1, 1]} : vector<1x128xf32> to vector<1x32xf32>
    %70 = vector.extract_strided_slice %66 {offsets = [0, 96], sizes = [1, 32], strides = [1, 1]} : vector<1x128xf32> to vector<1x32xf32>
    %cst_29 = arith.constant 2.000000e+00 : f32
    %71 = vector.broadcast %cst_29 : f32 to vector<1x32xf32>
    %72 = arith.mulf %71, %70 : vector<1x32xf32>
    %cst_30 = arith.constant 1.000000e+00 : f32
    %73 = vector.broadcast %cst_30 : f32 to vector<1x32xf32>
    %74 = arith.subf %72, %73 : vector<1x32xf32>
    %75 = arith.mulf %68, %33 : vector<1x32xf32>
    %76 = arith.mulf %67, %74 : vector<1x32xf32>
    %77 = arith.addf %75, %76 : vector<1x32xf32>
    %78 = math.tanh %77 : vector<1x32xf32>
    %79 = arith.mulf %69, %78 : vector<1x32xf32>
    %80 = arith.truncf %79 : vector<1x32xf32> to vector<1x32xbf16>
    %81 = tpu.concatenate %80, %58 in 1 : vector<1x32xbf16>, vector<1x32xbf16> -> vector<1x64xbf16>
    %cst_31 = arith.constant dense<0.000000e+00> : vector<1x128xf32>
    %82 = tpu.matmul %81, %3, %cst_31 {dimension_numbers = #tpu.dot_dimension_numbers<[1], [0], [0], [1], [0, 0, 1, 1], [], []>} : vector<1x64xbf16>, vector<64x128xbf16>, vector<1x128xf32> -> vector<1x128xf32>
    %83 = arith.addf %82, %4 : vector<1x128xf32>
    %84 = arith.negf %83 : vector<1x128xf32>
    %85 = math.exp %84 : vector<1x128xf32>
    %cst_32 = arith.constant 1.000000e+00 : f32
    %86 = vector.broadcast %cst_32 : f32 to vector<1x128xf32>
    %87 = arith.addf %86, %85 : vector<1x128xf32>
    %88 = arith.divf %86, %87 : vector<1x128xf32>
    %89 = vector.extract_strided_slice %88 {offsets = [0, 0], sizes = [1, 32], strides = [1, 1]} : vector<1x128xf32> to vector<1x32xf32>
    %90 = vector.extract_strided_slice %88 {offsets = [0, 32], sizes = [1, 32], strides = [1, 1]} : vector<1x128xf32> to vector<1x32xf32>
    %91 = vector.extract_strided_slice %88 {offsets = [0, 64], sizes = [1, 32], strides = [1, 1]} : vector<1x128xf32> to vector<1x32xf32>
    %92 = vector.extract_strided_slice %88 {offsets = [0, 96], sizes = [1, 32], strides = [1, 1]} : vector<1x128xf32> to vector<1x32xf32>
    %cst_33 = arith.constant 2.000000e+00 : f32
    %93 = vector.broadcast %cst_33 : f32 to vector<1x32xf32>
    %94 = arith.mulf %93, %92 : vector<1x32xf32>
    %cst_34 = arith.constant 1.000000e+00 : f32
    %95 = vector.broadcast %cst_34 : f32 to vector<1x32xf32>
    %96 = arith.subf %94, %95 : vector<1x32xf32>
    %97 = arith.mulf %90, %55 : vector<1x32xf32>
    %98 = arith.mulf %89, %96 : vector<1x32xf32>
    %99 = arith.addf %97, %98 : vector<1x32xf32>
    %100 = math.tanh %99 : vector<1x32xf32>
    %101 = arith.mulf %91, %100 : vector<1x32xf32>
    %102 = arith.truncf %101 : vector<1x32xf32> to vector<1x32xbf16>
    %103 = vector.extract_strided_slice %10 {offsets = [2, 0], sizes = [1, 128], strides = [1, 1]} : vector<8x128xf32> to vector<1x128xf32>
    %cst_35 = arith.constant dense<0.000000e+00> : vector<1x128xf32>
    %104 = tpu.matmul %80, %1, %cst_35 {dimension_numbers = #tpu.dot_dimension_numbers<[1], [0], [0], [1], [0, 0, 1, 1], [], []>} : vector<1x32xbf16>, vector<32x128xbf16>, vector<1x128xf32> -> vector<1x128xf32>
    %105 = arith.addf %103, %104 : vector<1x128xf32>
    %106 = arith.negf %105 : vector<1x128xf32>
    %107 = math.exp %106 : vector<1x128xf32>
    %cst_36 = arith.constant 1.000000e+00 : f32
    %108 = vector.broadcast %cst_36 : f32 to vector<1x128xf32>
    %109 = arith.addf %108, %107 : vector<1x128xf32>
    %110 = arith.divf %108, %109 : vector<1x128xf32>
    %111 = vector.extract_strided_slice %110 {offsets = [0, 0], sizes = [1, 32], strides = [1, 1]} : vector<1x128xf32> to vector<1x32xf32>
    %112 = vector.extract_strided_slice %110 {offsets = [0, 32], sizes = [1, 32], strides = [1, 1]} : vector<1x128xf32> to vector<1x32xf32>
    %113 = vector.extract_strided_slice %110 {offsets = [0, 64], sizes = [1, 32], strides = [1, 1]} : vector<1x128xf32> to vector<1x32xf32>
    %114 = vector.extract_strided_slice %110 {offsets = [0, 96], sizes = [1, 32], strides = [1, 1]} : vector<1x128xf32> to vector<1x32xf32>
    %cst_37 = arith.constant 2.000000e+00 : f32
    %115 = vector.broadcast %cst_37 : f32 to vector<1x32xf32>
    %116 = arith.mulf %115, %114 : vector<1x32xf32>
    %cst_38 = arith.constant 1.000000e+00 : f32
    %117 = vector.broadcast %cst_38 : f32 to vector<1x32xf32>
    %118 = arith.subf %116, %117 : vector<1x32xf32>
    %119 = arith.mulf %112, %77 : vector<1x32xf32>
    %120 = arith.mulf %111, %118 : vector<1x32xf32>
    %121 = arith.addf %119, %120 : vector<1x32xf32>
    %122 = math.tanh %121 : vector<1x32xf32>
    %123 = arith.mulf %113, %122 : vector<1x32xf32>
    %124 = arith.truncf %123 : vector<1x32xf32> to vector<1x32xbf16>
    %125 = tpu.concatenate %124, %102 in 1 : vector<1x32xbf16>, vector<1x32xbf16> -> vector<1x64xbf16>
    %cst_39 = arith.constant dense<0.000000e+00> : vector<1x128xf32>
    %126 = tpu.matmul %125, %3, %cst_39 {dimension_numbers = #tpu.dot_dimension_numbers<[1], [0], [0], [1], [0, 0, 1, 1], [], []>} : vector<1x64xbf16>, vector<64x128xbf16>, vector<1x128xf32> -> vector<1x128xf32>
    %127 = arith.addf %126, %4 : vector<1x128xf32>
    %128 = arith.negf %127 : vector<1x128xf32>
    %129 = math.exp %128 : vector<1x128xf32>
    %cst_40 = arith.constant 1.000000e+00 : f32
    %130 = vector.broadcast %cst_40 : f32 to vector<1x128xf32>
    %131 = arith.addf %130, %129 : vector<1x128xf32>
    %132 = arith.divf %130, %131 : vector<1x128xf32>
    %133 = vector.extract_strided_slice %132 {offsets = [0, 0], sizes = [1, 32], strides = [1, 1]} : vector<1x128xf32> to vector<1x32xf32>
    %134 = vector.extract_strided_slice %132 {offsets = [0, 32], sizes = [1, 32], strides = [1, 1]} : vector<1x128xf32> to vector<1x32xf32>
    %135 = vector.extract_strided_slice %132 {offsets = [0, 64], sizes = [1, 32], strides = [1, 1]} : vector<1x128xf32> to vector<1x32xf32>
    %136 = vector.extract_strided_slice %132 {offsets = [0, 96], sizes = [1, 32], strides = [1, 1]} : vector<1x128xf32> to vector<1x32xf32>
    %cst_41 = arith.constant 2.000000e+00 : f32
    %137 = vector.broadcast %cst_41 : f32 to vector<1x32xf32>
    %138 = arith.mulf %137, %136 : vector<1x32xf32>
    %cst_42 = arith.constant 1.000000e+00 : f32
    %139 = vector.broadcast %cst_42 : f32 to vector<1x32xf32>
    %140 = arith.subf %138, %139 : vector<1x32xf32>
    %141 = arith.mulf %134, %99 : vector<1x32xf32>
    %142 = arith.mulf %133, %140 : vector<1x32xf32>
    %143 = arith.addf %141, %142 : vector<1x32xf32>
    %144 = math.tanh %143 : vector<1x32xf32>
    %145 = arith.mulf %135, %144 : vector<1x32xf32>
    %146 = arith.truncf %145 : vector<1x32xf32> to vector<1x32xbf16>
    %147 = vector.extract_strided_slice %10 {offsets = [3, 0], sizes = [1, 128], strides = [1, 1]} : vector<8x128xf32> to vector<1x128xf32>
    %cst_43 = arith.constant dense<0.000000e+00> : vector<1x128xf32>
    %148 = tpu.matmul %124, %1, %cst_43 {dimension_numbers = #tpu.dot_dimension_numbers<[1], [0], [0], [1], [0, 0, 1, 1], [], []>} : vector<1x32xbf16>, vector<32x128xbf16>, vector<1x128xf32> -> vector<1x128xf32>
    %149 = arith.addf %147, %148 : vector<1x128xf32>
    %150 = arith.negf %149 : vector<1x128xf32>
    %151 = math.exp %150 : vector<1x128xf32>
    %cst_44 = arith.constant 1.000000e+00 : f32
    %152 = vector.broadcast %cst_44 : f32 to vector<1x128xf32>
    %153 = arith.addf %152, %151 : vector<1x128xf32>
    %154 = arith.divf %152, %153 : vector<1x128xf32>
    %155 = vector.extract_strided_slice %154 {offsets = [0, 0], sizes = [1, 32], strides = [1, 1]} : vector<1x128xf32> to vector<1x32xf32>
    %156 = vector.extract_strided_slice %154 {offsets = [0, 32], sizes = [1, 32], strides = [1, 1]} : vector<1x128xf32> to vector<1x32xf32>
    %157 = vector.extract_strided_slice %154 {offsets = [0, 64], sizes = [1, 32], strides = [1, 1]} : vector<1x128xf32> to vector<1x32xf32>
    %158 = vector.extract_strided_slice %154 {offsets = [0, 96], sizes = [1, 32], strides = [1, 1]} : vector<1x128xf32> to vector<1x32xf32>
    %cst_45 = arith.constant 2.000000e+00 : f32
    %159 = vector.broadcast %cst_45 : f32 to vector<1x32xf32>
    %160 = arith.mulf %159, %158 : vector<1x32xf32>
    %cst_46 = arith.constant 1.000000e+00 : f32
    %161 = vector.broadcast %cst_46 : f32 to vector<1x32xf32>
    %162 = arith.subf %160, %161 : vector<1x32xf32>
    %163 = arith.mulf %156, %121 : vector<1x32xf32>
    %164 = arith.mulf %155, %162 : vector<1x32xf32>
    %165 = arith.addf %163, %164 : vector<1x32xf32>
    %166 = math.tanh %165 : vector<1x32xf32>
    %167 = arith.mulf %157, %166 : vector<1x32xf32>
    %168 = arith.truncf %167 : vector<1x32xf32> to vector<1x32xbf16>
    %169 = tpu.concatenate %168, %146 in 1 : vector<1x32xbf16>, vector<1x32xbf16> -> vector<1x64xbf16>
    %cst_47 = arith.constant dense<0.000000e+00> : vector<1x128xf32>
    %170 = tpu.matmul %169, %3, %cst_47 {dimension_numbers = #tpu.dot_dimension_numbers<[1], [0], [0], [1], [0, 0, 1, 1], [], []>} : vector<1x64xbf16>, vector<64x128xbf16>, vector<1x128xf32> -> vector<1x128xf32>
    %171 = arith.addf %170, %4 : vector<1x128xf32>
    %172 = arith.negf %171 : vector<1x128xf32>
    %173 = math.exp %172 : vector<1x128xf32>
    %cst_48 = arith.constant 1.000000e+00 : f32
    %174 = vector.broadcast %cst_48 : f32 to vector<1x128xf32>
    %175 = arith.addf %174, %173 : vector<1x128xf32>
    %176 = arith.divf %174, %175 : vector<1x128xf32>
    %177 = vector.extract_strided_slice %176 {offsets = [0, 0], sizes = [1, 32], strides = [1, 1]} : vector<1x128xf32> to vector<1x32xf32>
    %178 = vector.extract_strided_slice %176 {offsets = [0, 32], sizes = [1, 32], strides = [1, 1]} : vector<1x128xf32> to vector<1x32xf32>
    %179 = vector.extract_strided_slice %176 {offsets = [0, 64], sizes = [1, 32], strides = [1, 1]} : vector<1x128xf32> to vector<1x32xf32>
    %180 = vector.extract_strided_slice %176 {offsets = [0, 96], sizes = [1, 32], strides = [1, 1]} : vector<1x128xf32> to vector<1x32xf32>
    %cst_49 = arith.constant 2.000000e+00 : f32
    %181 = vector.broadcast %cst_49 : f32 to vector<1x32xf32>
    %182 = arith.mulf %181, %180 : vector<1x32xf32>
    %cst_50 = arith.constant 1.000000e+00 : f32
    %183 = vector.broadcast %cst_50 : f32 to vector<1x32xf32>
    %184 = arith.subf %182, %183 : vector<1x32xf32>
    %185 = arith.mulf %178, %143 : vector<1x32xf32>
    %186 = arith.mulf %177, %184 : vector<1x32xf32>
    %187 = arith.addf %185, %186 : vector<1x32xf32>
    %188 = math.tanh %187 : vector<1x32xf32>
    %189 = arith.mulf %179, %188 : vector<1x32xf32>
    %190 = arith.truncf %189 : vector<1x32xf32> to vector<1x32xbf16>
    %191 = vector.extract_strided_slice %10 {offsets = [4, 0], sizes = [1, 128], strides = [1, 1]} : vector<8x128xf32> to vector<1x128xf32>
    %cst_51 = arith.constant dense<0.000000e+00> : vector<1x128xf32>
    %192 = tpu.matmul %168, %1, %cst_51 {dimension_numbers = #tpu.dot_dimension_numbers<[1], [0], [0], [1], [0, 0, 1, 1], [], []>} : vector<1x32xbf16>, vector<32x128xbf16>, vector<1x128xf32> -> vector<1x128xf32>
    %193 = arith.addf %191, %192 : vector<1x128xf32>
    %194 = arith.negf %193 : vector<1x128xf32>
    %195 = math.exp %194 : vector<1x128xf32>
    %cst_52 = arith.constant 1.000000e+00 : f32
    %196 = vector.broadcast %cst_52 : f32 to vector<1x128xf32>
    %197 = arith.addf %196, %195 : vector<1x128xf32>
    %198 = arith.divf %196, %197 : vector<1x128xf32>
    %199 = vector.extract_strided_slice %198 {offsets = [0, 0], sizes = [1, 32], strides = [1, 1]} : vector<1x128xf32> to vector<1x32xf32>
    %200 = vector.extract_strided_slice %198 {offsets = [0, 32], sizes = [1, 32], strides = [1, 1]} : vector<1x128xf32> to vector<1x32xf32>
    %201 = vector.extract_strided_slice %198 {offsets = [0, 64], sizes = [1, 32], strides = [1, 1]} : vector<1x128xf32> to vector<1x32xf32>
    %202 = vector.extract_strided_slice %198 {offsets = [0, 96], sizes = [1, 32], strides = [1, 1]} : vector<1x128xf32> to vector<1x32xf32>
    %cst_53 = arith.constant 2.000000e+00 : f32
    %203 = vector.broadcast %cst_53 : f32 to vector<1x32xf32>
    %204 = arith.mulf %203, %202 : vector<1x32xf32>
    %cst_54 = arith.constant 1.000000e+00 : f32
    %205 = vector.broadcast %cst_54 : f32 to vector<1x32xf32>
    %206 = arith.subf %204, %205 : vector<1x32xf32>
    %207 = arith.mulf %200, %165 : vector<1x32xf32>
    %208 = arith.mulf %199, %206 : vector<1x32xf32>
    %209 = arith.addf %207, %208 : vector<1x32xf32>
    %210 = math.tanh %209 : vector<1x32xf32>
    %211 = arith.mulf %201, %210 : vector<1x32xf32>
    %212 = arith.truncf %211 : vector<1x32xf32> to vector<1x32xbf16>
    %213 = tpu.concatenate %212, %190 in 1 : vector<1x32xbf16>, vector<1x32xbf16> -> vector<1x64xbf16>
    %cst_55 = arith.constant dense<0.000000e+00> : vector<1x128xf32>
    %214 = tpu.matmul %213, %3, %cst_55 {dimension_numbers = #tpu.dot_dimension_numbers<[1], [0], [0], [1], [0, 0, 1, 1], [], []>} : vector<1x64xbf16>, vector<64x128xbf16>, vector<1x128xf32> -> vector<1x128xf32>
    %215 = arith.addf %214, %4 : vector<1x128xf32>
    %216 = arith.negf %215 : vector<1x128xf32>
    %217 = math.exp %216 : vector<1x128xf32>
    %cst_56 = arith.constant 1.000000e+00 : f32
    %218 = vector.broadcast %cst_56 : f32 to vector<1x128xf32>
    %219 = arith.addf %218, %217 : vector<1x128xf32>
    %220 = arith.divf %218, %219 : vector<1x128xf32>
    %221 = vector.extract_strided_slice %220 {offsets = [0, 0], sizes = [1, 32], strides = [1, 1]} : vector<1x128xf32> to vector<1x32xf32>
    %222 = vector.extract_strided_slice %220 {offsets = [0, 32], sizes = [1, 32], strides = [1, 1]} : vector<1x128xf32> to vector<1x32xf32>
    %223 = vector.extract_strided_slice %220 {offsets = [0, 64], sizes = [1, 32], strides = [1, 1]} : vector<1x128xf32> to vector<1x32xf32>
    %224 = vector.extract_strided_slice %220 {offsets = [0, 96], sizes = [1, 32], strides = [1, 1]} : vector<1x128xf32> to vector<1x32xf32>
    %cst_57 = arith.constant 2.000000e+00 : f32
    %225 = vector.broadcast %cst_57 : f32 to vector<1x32xf32>
    %226 = arith.mulf %225, %224 : vector<1x32xf32>
    %cst_58 = arith.constant 1.000000e+00 : f32
    %227 = vector.broadcast %cst_58 : f32 to vector<1x32xf32>
    %228 = arith.subf %226, %227 : vector<1x32xf32>
    %229 = arith.mulf %222, %187 : vector<1x32xf32>
    %230 = arith.mulf %221, %228 : vector<1x32xf32>
    %231 = arith.addf %229, %230 : vector<1x32xf32>
    %232 = math.tanh %231 : vector<1x32xf32>
    %233 = arith.mulf %223, %232 : vector<1x32xf32>
    %234 = arith.truncf %233 : vector<1x32xf32> to vector<1x32xbf16>
    %235 = vector.extract_strided_slice %10 {offsets = [5, 0], sizes = [1, 128], strides = [1, 1]} : vector<8x128xf32> to vector<1x128xf32>
    %cst_59 = arith.constant dense<0.000000e+00> : vector<1x128xf32>
    %236 = tpu.matmul %212, %1, %cst_59 {dimension_numbers = #tpu.dot_dimension_numbers<[1], [0], [0], [1], [0, 0, 1, 1], [], []>} : vector<1x32xbf16>, vector<32x128xbf16>, vector<1x128xf32> -> vector<1x128xf32>
    %237 = arith.addf %235, %236 : vector<1x128xf32>
    %238 = arith.negf %237 : vector<1x128xf32>
    %239 = math.exp %238 : vector<1x128xf32>
    %cst_60 = arith.constant 1.000000e+00 : f32
    %240 = vector.broadcast %cst_60 : f32 to vector<1x128xf32>
    %241 = arith.addf %240, %239 : vector<1x128xf32>
    %242 = arith.divf %240, %241 : vector<1x128xf32>
    %243 = vector.extract_strided_slice %242 {offsets = [0, 0], sizes = [1, 32], strides = [1, 1]} : vector<1x128xf32> to vector<1x32xf32>
    %244 = vector.extract_strided_slice %242 {offsets = [0, 32], sizes = [1, 32], strides = [1, 1]} : vector<1x128xf32> to vector<1x32xf32>
    %245 = vector.extract_strided_slice %242 {offsets = [0, 64], sizes = [1, 32], strides = [1, 1]} : vector<1x128xf32> to vector<1x32xf32>
    %246 = vector.extract_strided_slice %242 {offsets = [0, 96], sizes = [1, 32], strides = [1, 1]} : vector<1x128xf32> to vector<1x32xf32>
    %cst_61 = arith.constant 2.000000e+00 : f32
    %247 = vector.broadcast %cst_61 : f32 to vector<1x32xf32>
    %248 = arith.mulf %247, %246 : vector<1x32xf32>
    %cst_62 = arith.constant 1.000000e+00 : f32
    %249 = vector.broadcast %cst_62 : f32 to vector<1x32xf32>
    %250 = arith.subf %248, %249 : vector<1x32xf32>
    %251 = arith.mulf %244, %209 : vector<1x32xf32>
    %252 = arith.mulf %243, %250 : vector<1x32xf32>
    %253 = arith.addf %251, %252 : vector<1x32xf32>
    %254 = math.tanh %253 : vector<1x32xf32>
    %255 = arith.mulf %245, %254 : vector<1x32xf32>
    %256 = arith.truncf %255 : vector<1x32xf32> to vector<1x32xbf16>
    %257 = tpu.concatenate %256, %234 in 1 : vector<1x32xbf16>, vector<1x32xbf16> -> vector<1x64xbf16>
    %cst_63 = arith.constant dense<0.000000e+00> : vector<1x128xf32>
    %258 = tpu.matmul %257, %3, %cst_63 {dimension_numbers = #tpu.dot_dimension_numbers<[1], [0], [0], [1], [0, 0, 1, 1], [], []>} : vector<1x64xbf16>, vector<64x128xbf16>, vector<1x128xf32> -> vector<1x128xf32>
    %259 = arith.addf %258, %4 : vector<1x128xf32>
    %260 = arith.negf %259 : vector<1x128xf32>
    %261 = math.exp %260 : vector<1x128xf32>
    %cst_64 = arith.constant 1.000000e+00 : f32
    %262 = vector.broadcast %cst_64 : f32 to vector<1x128xf32>
    %263 = arith.addf %262, %261 : vector<1x128xf32>
    %264 = arith.divf %262, %263 : vector<1x128xf32>
    %265 = vector.extract_strided_slice %264 {offsets = [0, 0], sizes = [1, 32], strides = [1, 1]} : vector<1x128xf32> to vector<1x32xf32>
    %266 = vector.extract_strided_slice %264 {offsets = [0, 32], sizes = [1, 32], strides = [1, 1]} : vector<1x128xf32> to vector<1x32xf32>
    %267 = vector.extract_strided_slice %264 {offsets = [0, 64], sizes = [1, 32], strides = [1, 1]} : vector<1x128xf32> to vector<1x32xf32>
    %268 = vector.extract_strided_slice %264 {offsets = [0, 96], sizes = [1, 32], strides = [1, 1]} : vector<1x128xf32> to vector<1x32xf32>
    %cst_65 = arith.constant 2.000000e+00 : f32
    %269 = vector.broadcast %cst_65 : f32 to vector<1x32xf32>
    %270 = arith.mulf %269, %268 : vector<1x32xf32>
    %cst_66 = arith.constant 1.000000e+00 : f32
    %271 = vector.broadcast %cst_66 : f32 to vector<1x32xf32>
    %272 = arith.subf %270, %271 : vector<1x32xf32>
    %273 = arith.mulf %266, %231 : vector<1x32xf32>
    %274 = arith.mulf %265, %272 : vector<1x32xf32>
    %275 = arith.addf %273, %274 : vector<1x32xf32>
    %276 = math.tanh %275 : vector<1x32xf32>
    %277 = arith.mulf %267, %276 : vector<1x32xf32>
    %278 = arith.truncf %277 : vector<1x32xf32> to vector<1x32xbf16>
    %279 = vector.extract_strided_slice %10 {offsets = [6, 0], sizes = [1, 128], strides = [1, 1]} : vector<8x128xf32> to vector<1x128xf32>
    %cst_67 = arith.constant dense<0.000000e+00> : vector<1x128xf32>
    %280 = tpu.matmul %256, %1, %cst_67 {dimension_numbers = #tpu.dot_dimension_numbers<[1], [0], [0], [1], [0, 0, 1, 1], [], []>} : vector<1x32xbf16>, vector<32x128xbf16>, vector<1x128xf32> -> vector<1x128xf32>
    %281 = arith.addf %279, %280 : vector<1x128xf32>
    %282 = arith.negf %281 : vector<1x128xf32>
    %283 = math.exp %282 : vector<1x128xf32>
    %cst_68 = arith.constant 1.000000e+00 : f32
    %284 = vector.broadcast %cst_68 : f32 to vector<1x128xf32>
    %285 = arith.addf %284, %283 : vector<1x128xf32>
    %286 = arith.divf %284, %285 : vector<1x128xf32>
    %287 = vector.extract_strided_slice %286 {offsets = [0, 0], sizes = [1, 32], strides = [1, 1]} : vector<1x128xf32> to vector<1x32xf32>
    %288 = vector.extract_strided_slice %286 {offsets = [0, 32], sizes = [1, 32], strides = [1, 1]} : vector<1x128xf32> to vector<1x32xf32>
    %289 = vector.extract_strided_slice %286 {offsets = [0, 64], sizes = [1, 32], strides = [1, 1]} : vector<1x128xf32> to vector<1x32xf32>
    %290 = vector.extract_strided_slice %286 {offsets = [0, 96], sizes = [1, 32], strides = [1, 1]} : vector<1x128xf32> to vector<1x32xf32>
    %cst_69 = arith.constant 2.000000e+00 : f32
    %291 = vector.broadcast %cst_69 : f32 to vector<1x32xf32>
    %292 = arith.mulf %291, %290 : vector<1x32xf32>
    %cst_70 = arith.constant 1.000000e+00 : f32
    %293 = vector.broadcast %cst_70 : f32 to vector<1x32xf32>
    %294 = arith.subf %292, %293 : vector<1x32xf32>
    %295 = arith.mulf %288, %253 : vector<1x32xf32>
    %296 = arith.mulf %287, %294 : vector<1x32xf32>
    %297 = arith.addf %295, %296 : vector<1x32xf32>
    %298 = math.tanh %297 : vector<1x32xf32>
    %299 = arith.mulf %289, %298 : vector<1x32xf32>
    %300 = arith.truncf %299 : vector<1x32xf32> to vector<1x32xbf16>
    %301 = tpu.concatenate %300, %278 in 1 : vector<1x32xbf16>, vector<1x32xbf16> -> vector<1x64xbf16>
    %cst_71 = arith.constant dense<0.000000e+00> : vector<1x128xf32>
    %302 = tpu.matmul %301, %3, %cst_71 {dimension_numbers = #tpu.dot_dimension_numbers<[1], [0], [0], [1], [0, 0, 1, 1], [], []>} : vector<1x64xbf16>, vector<64x128xbf16>, vector<1x128xf32> -> vector<1x128xf32>
    %303 = arith.addf %302, %4 : vector<1x128xf32>
    %304 = arith.negf %303 : vector<1x128xf32>
    %305 = math.exp %304 : vector<1x128xf32>
    %cst_72 = arith.constant 1.000000e+00 : f32
    %306 = vector.broadcast %cst_72 : f32 to vector<1x128xf32>
    %307 = arith.addf %306, %305 : vector<1x128xf32>
    %308 = arith.divf %306, %307 : vector<1x128xf32>
    %309 = vector.extract_strided_slice %308 {offsets = [0, 0], sizes = [1, 32], strides = [1, 1]} : vector<1x128xf32> to vector<1x32xf32>
    %310 = vector.extract_strided_slice %308 {offsets = [0, 32], sizes = [1, 32], strides = [1, 1]} : vector<1x128xf32> to vector<1x32xf32>
    %311 = vector.extract_strided_slice %308 {offsets = [0, 64], sizes = [1, 32], strides = [1, 1]} : vector<1x128xf32> to vector<1x32xf32>
    %312 = vector.extract_strided_slice %308 {offsets = [0, 96], sizes = [1, 32], strides = [1, 1]} : vector<1x128xf32> to vector<1x32xf32>
    %cst_73 = arith.constant 2.000000e+00 : f32
    %313 = vector.broadcast %cst_73 : f32 to vector<1x32xf32>
    %314 = arith.mulf %313, %312 : vector<1x32xf32>
    %cst_74 = arith.constant 1.000000e+00 : f32
    %315 = vector.broadcast %cst_74 : f32 to vector<1x32xf32>
    %316 = arith.subf %314, %315 : vector<1x32xf32>
    %317 = arith.mulf %310, %275 : vector<1x32xf32>
    %318 = arith.mulf %309, %316 : vector<1x32xf32>
    %319 = arith.addf %317, %318 : vector<1x32xf32>
    %320 = math.tanh %319 : vector<1x32xf32>
    %321 = arith.mulf %311, %320 : vector<1x32xf32>
    %322 = arith.truncf %321 : vector<1x32xf32> to vector<1x32xbf16>
    %323 = vector.extract_strided_slice %10 {offsets = [7, 0], sizes = [1, 128], strides = [1, 1]} : vector<8x128xf32> to vector<1x128xf32>
    %cst_75 = arith.constant dense<0.000000e+00> : vector<1x128xf32>
    %324 = tpu.matmul %300, %1, %cst_75 {dimension_numbers = #tpu.dot_dimension_numbers<[1], [0], [0], [1], [0, 0, 1, 1], [], []>} : vector<1x32xbf16>, vector<32x128xbf16>, vector<1x128xf32> -> vector<1x128xf32>
    %325 = arith.addf %323, %324 : vector<1x128xf32>
    %326 = arith.negf %325 : vector<1x128xf32>
    %327 = math.exp %326 : vector<1x128xf32>
    %cst_76 = arith.constant 1.000000e+00 : f32
    %328 = vector.broadcast %cst_76 : f32 to vector<1x128xf32>
    %329 = arith.addf %328, %327 : vector<1x128xf32>
    %330 = arith.divf %328, %329 : vector<1x128xf32>
    %331 = vector.extract_strided_slice %330 {offsets = [0, 0], sizes = [1, 32], strides = [1, 1]} : vector<1x128xf32> to vector<1x32xf32>
    %332 = vector.extract_strided_slice %330 {offsets = [0, 32], sizes = [1, 32], strides = [1, 1]} : vector<1x128xf32> to vector<1x32xf32>
    %333 = vector.extract_strided_slice %330 {offsets = [0, 64], sizes = [1, 32], strides = [1, 1]} : vector<1x128xf32> to vector<1x32xf32>
    %334 = vector.extract_strided_slice %330 {offsets = [0, 96], sizes = [1, 32], strides = [1, 1]} : vector<1x128xf32> to vector<1x32xf32>
    %cst_77 = arith.constant 2.000000e+00 : f32
    %335 = vector.broadcast %cst_77 : f32 to vector<1x32xf32>
    %336 = arith.mulf %335, %334 : vector<1x32xf32>
    %cst_78 = arith.constant 1.000000e+00 : f32
    %337 = vector.broadcast %cst_78 : f32 to vector<1x32xf32>
    %338 = arith.subf %336, %337 : vector<1x32xf32>
    %339 = arith.mulf %332, %297 : vector<1x32xf32>
    %340 = arith.mulf %331, %338 : vector<1x32xf32>
    %341 = arith.addf %339, %340 : vector<1x32xf32>
    %342 = math.tanh %341 : vector<1x32xf32>
    %343 = arith.mulf %333, %342 : vector<1x32xf32>
    %344 = arith.truncf %343 : vector<1x32xf32> to vector<1x32xbf16>
    %345 = tpu.concatenate %344, %322 in 1 : vector<1x32xbf16>, vector<1x32xbf16> -> vector<1x64xbf16>
    %cst_79 = arith.constant dense<0.000000e+00> : vector<1x128xf32>
    %346 = tpu.matmul %345, %3, %cst_79 {dimension_numbers = #tpu.dot_dimension_numbers<[1], [0], [0], [1], [0, 0, 1, 1], [], []>} : vector<1x64xbf16>, vector<64x128xbf16>, vector<1x128xf32> -> vector<1x128xf32>
    %347 = arith.addf %346, %4 : vector<1x128xf32>
    %348 = arith.negf %347 : vector<1x128xf32>
    %349 = math.exp %348 : vector<1x128xf32>
    %cst_80 = arith.constant 1.000000e+00 : f32
    %350 = vector.broadcast %cst_80 : f32 to vector<1x128xf32>
    %351 = arith.addf %350, %349 : vector<1x128xf32>
    %352 = arith.divf %350, %351 : vector<1x128xf32>
    %353 = vector.extract_strided_slice %352 {offsets = [0, 0], sizes = [1, 32], strides = [1, 1]} : vector<1x128xf32> to vector<1x32xf32>
    %354 = vector.extract_strided_slice %352 {offsets = [0, 32], sizes = [1, 32], strides = [1, 1]} : vector<1x128xf32> to vector<1x32xf32>
    %355 = vector.extract_strided_slice %352 {offsets = [0, 64], sizes = [1, 32], strides = [1, 1]} : vector<1x128xf32> to vector<1x32xf32>
    %356 = vector.extract_strided_slice %352 {offsets = [0, 96], sizes = [1, 32], strides = [1, 1]} : vector<1x128xf32> to vector<1x32xf32>
    %cst_81 = arith.constant 2.000000e+00 : f32
    %357 = vector.broadcast %cst_81 : f32 to vector<1x32xf32>
    %358 = arith.mulf %357, %356 : vector<1x32xf32>
    %cst_82 = arith.constant 1.000000e+00 : f32
    %359 = vector.broadcast %cst_82 : f32 to vector<1x32xf32>
    %360 = arith.subf %358, %359 : vector<1x32xf32>
    %361 = arith.mulf %354, %319 : vector<1x32xf32>
    %362 = arith.mulf %353, %360 : vector<1x32xf32>
    %363 = arith.addf %361, %362 : vector<1x32xf32>
    %364 = math.tanh %363 : vector<1x32xf32>
    %365 = arith.mulf %355, %364 : vector<1x32xf32>
    %366 = tpu.concatenate %57, %101, %145, %189, %233, %277, %321, %365 in 0 : vector<1x32xf32>, vector<1x32xf32>, vector<1x32xf32>, vector<1x32xf32>, vector<1x32xf32>, vector<1x32xf32>, vector<1x32xf32>, vector<1x32xf32> -> vector<8x32xf32>
    %367 = arith.truncf %366 : vector<8x32xf32> to vector<8x32xbf16>
    %cst_83 = arith.constant dense<0.000000e+00> : vector<8x8xf32>
    %368 = tpu.matmul %367, %5, %cst_83 {dimension_numbers = #tpu.dot_dimension_numbers<[1], [0], [0], [1], [0, 0, 1, 1], [], []>} : vector<8x32xbf16>, vector<32x8xbf16>, vector<8x8xf32> -> vector<8x8xf32>
    %369 = vector.broadcast %6 : vector<1x8xf32> to vector<8x8xf32>
    %370 = arith.addf %368, %369 : vector<8x8xf32>
    %c0_84 = arith.constant 0 : index
    %c0_85 = arith.constant 0 : index
    %371 = vector.load %arg8[%c0_84, %c0_85] : memref<8x8xf32, #tpu.memory_space<vmem>>, vector<8x8xf32>
    tpu.vector_store %arg8[%c0_84, %c0_85], %370 {strides = array<i32>} : memref<8x8xf32, #tpu.memory_space<vmem>>, vector<8x8xf32>,
    return
  }
}

</mosaic_0001>

<llo_original>
// kernel: tpu_custom_call.1
$region0: #{tpu_custom_call.1}
  #allocation0 [shape = 'u32[]', space=smem, size = 0x4, offset = 0x4, fixed_abs, tag = 'smem constant byte address 0x4 - core index']
  #allocation1 [shape = 'u32[144,128]{1,0:T(1,128)}', space=vmem, size = 0x12000, scoped, tag = 'internal scratch']
  %s0 = inlined_call_operand.vmem [shape: bf16[8,4], index: 0, kind: input, shape index: {}]
  %s1 = inlined_call_operand.hbm [shape: bf16[4,128], index: 1, kind: input, shape index: {}]
  %s2 = inlined_call_operand.hbm [shape: bf16[32,128], index: 2, kind: input, shape index: {}]
  %s3 = inlined_call_operand.hbm [shape: f32[1,128], index: 3, kind: input, shape index: {}]
  %s4 = inlined_call_operand.vmem [shape: bf16[64,128], index: 4, kind: input, shape index: {}]
  %s5 = inlined_call_operand.hbm [shape: f32[1,128], index: 5, kind: input, shape index: {}]
  %s6 = inlined_call_operand.vmem [shape: bf16[32,8], index: 6, kind: input, shape index: {}]
  %s7 = inlined_call_operand.vmem [shape: f32[1,8], index: 7, kind: input, shape index: {}]
  %s8 = inlined_call_operand.hbm [shape: f32[8,8], index: 8, kind: output, shape index: {}]
  %s9 = sld [smem:[#allocation0]]
  $region58: #{tpu_custom_call.1} parent=0
    _
  %s11 = ssub.s32 1, %s9
  %s12 = scalar_select 0, %s11, %s9
  $region1: #{tpu_custom_call.1} parent=0
    #allocation2 [shape = 'u8[1024]{0}', space=vmem, size = 0x400, scoped, tag = 'input window, operand 1, single buffered']
    #allocation3 [shape = 's32[1]{0}', space=sflag, size = 0x4, scoped, tag = 'scoped memory for tpu_custom_call.1']
    #allocation4 [shape = 's32[1]{0}', space=sflag, size = 0x4, scoped, tag = 'scoped memory for tpu_custom_call.1']
    #allocation5 [shape = 'u8[8192]{0}', space=vmem, size = 0x2000, scoped, tag = 'input window, operand 2, single buffered']
    #allocation6 [shape = 's32[1]{0}', space=sflag, size = 0x4, scoped, tag = 'scoped memory for tpu_custom_call.1']
    #allocation7 [shape = 'u8[512]{0}', space=vmem, size = 0x400, scoped, tag = 'input window, operand 3, single buffered']
    #allocation8 [shape = 'u8[512]{0}', space=vmem, size = 0x400, scoped, tag = 'input window, operand 5, single buffered']
    #allocation9 [shape = 's32[1]{0}', space=sflag, size = 0x4, scoped, tag = 'scoped memory for tpu_custom_call.1']
    #allocation10 [shape = 'u8[4096]{0}', space=vmem, size = 0x1000, scoped, tag = 'output window, operand 0, single buffered']
    %13 = vsyncpa [#allocation3], 0
    %14 = vsyncpa [#allocation6], 0
    %15 = vsyncpa [#allocation9], 0
    %16 = vsyncpa [#allocation4], 0
    // Predicated region
    $region2: #{tpu_custom_call.1} parent=1 // pred_check
      _
    $region3: #{tpu_custom_call.1} parent=1 // pred_check_branch
      %18 = sbr.rel (0) target = $region5
    $region4: #{tpu_custom_call.1} parent=1 // pred_region
      _
    $region5: #{tpu_custom_call.1} parent=1 // pred_fallthru
      _
    // Predicated region
    $region6: #{tpu_custom_call.1} parent=1 // pred_check
      _
    $region7: #{tpu_custom_call.1} parent=1 // pred_check_branch
      %20 = sbr.rel (0) target = $region9
    $region8: #{tpu_custom_call.1} parent=1 // pred_region
      %s22 = ssub.s32 32, 32
      %23 = vsyncadd [#allocation3], %s22
      %s25 = sshll.u32 [#allocation2], 4
      %s26 = int_to_ptr.vmem [resolvable:$true] %s25
      %28 = dma.hbm_to_vmem [thread:$0]  %s1, 32, %s26, [#allocation3]
    $region9: #{tpu_custom_call.1} parent=1 // pred_fallthru
      _
    // Predicated region
    $region10: #{tpu_custom_call.1} parent=1 // pred_check
      _
    $region11: #{tpu_custom_call.1} parent=1 // pred_check_branch
      %30 = sbr.rel (0) target = $region13
    $region12: #{tpu_custom_call.1} parent=1 // pred_region
      %s32 = ssub.s32 256, 256
      %33 = vsyncadd [#allocation6], %s32
      %s34 = sshll.u32 [#allocation5], 4
      %s35 = int_to_ptr.vmem [resolvable:$true] %s34
      %40 = dma.hbm_to_vmem [thread:$0]  %s2, 256, %s35, [#allocation6], 64, 64, 4
    $region13: #{tpu_custom_call.1} parent=1 // pred_fallthru
      _
    // Predicated region
    $region14: #{tpu_custom_call.1} parent=1 // pred_check
      _
    $region15: #{tpu_custom_call.1} parent=1 // pred_check_branch
      %42 = sbr.rel (0) target = $region17
    $region16: #{tpu_custom_call.1} parent=1 // pred_region
      %s44 = ssub.s32 16, 16
      %45 = vsyncadd [#allocation6], %s44
      %s47 = sshll.u32 [#allocation7], 4
      %s48 = int_to_ptr.vmem [resolvable:$true] %s47
      %50 = dma.hbm_to_vmem [thread:$0]  %s3, 16, %s48, [#allocation6]
    $region17: #{tpu_custom_call.1} parent=1 // pred_fallthru
      _
    // Predicated region
    $region18: #{tpu_custom_call.1} parent=1 // pred_check
      _
    $region19: #{tpu_custom_call.1} parent=1 // pred_check_branch
      %52 = sbr.rel (0) target = $region21
    $region20: #{tpu_custom_call.1} parent=1 // pred_region
      _
    $region21: #{tpu_custom_call.1} parent=1 // pred_fallthru
      _
    // Predicated region
    $region22: #{tpu_custom_call.1} parent=1 // pred_check
      _
    $region23: #{tpu_custom_call.1} parent=1 // pred_check_branch
      %54 = sbr.rel (0) target = $region25
    $region24: #{tpu_custom_call.1} parent=1 // pred_region
      %s56 = ssub.s32 16, 16
      %57 = vsyncadd [#allocation9], %s56
      %s59 = sshll.u32 [#allocation8], 4
      %s60 = int_to_ptr.vmem [resolvable:$true] %s59
      %62 = dma.hbm_to_vmem [thread:$0]  %s5, 16, %s60, [#allocation9]
    $region25: #{tpu_custom_call.1} parent=1 // pred_fallthru
      _
    // Predicated region
    $region26: #{tpu_custom_call.1} parent=1 // pred_check
      _
    $region27: #{tpu_custom_call.1} parent=1 // pred_check_branch
      %64 = sbr.rel (0) target = $region29
    $region28: #{tpu_custom_call.1} parent=1 // pred_region
      _
    $region29: #{tpu_custom_call.1} parent=1 // pred_fallthru
      _
    // Predicated region
    $region30: #{tpu_custom_call.1} parent=1 // pred_check
      _
    $region31: #{tpu_custom_call.1} parent=1 // pred_check_branch
      %66 = sbr.rel (0) target = $region33
    $region32: #{tpu_custom_call.1} parent=1 // pred_region
      _
    $region33: #{tpu_custom_call.1} parent=1 // pred_fallthru
      _
    // Predicated region
    $region34: #{tpu_custom_call.1} parent=1 // pred_check
      _
    $region35: #{tpu_custom_call.1} parent=1 // pred_check_branch
      %68 = sbr.rel (0) target = $region37
    $region36: #{tpu_custom_call.1} parent=1 // pred_region
      %69 = dma.done [#allocation3], 32
    $region37: #{tpu_custom_call.1} parent=1 // pred_fallthru
      _
    // Predicated region
    $region38: #{tpu_custom_call.1} parent=1 // pred_check
      _
    $region39: #{tpu_custom_call.1} parent=1 // pred_check_branch
      %71 = sbr.rel (0) target = $region41
    $region40: #{tpu_custom_call.1} parent=1 // pred_region
      %72 = dma.done [#allocation6], 256
    $region41: #{tpu_custom_call.1} parent=1 // pred_fallthru
      _
    // Predicated region
    $region42: #{tpu_custom_call.1} parent=1 // pred_check
      _
    $region43: #{tpu_custom_call.1} parent=1 // pred_check_branch
      %74 = sbr.rel (0) target = $region45
    $region44: #{tpu_custom_call.1} parent=1 // pred_region
      %75 = dma.done [#allocation6], 16
    $region45: #{tpu_custom_call.1} parent=1 // pred_fallthru
      _
    // Predicated region
    $region46: #{tpu_custom_call.1} parent=1 // pred_check
      _
    $region47: #{tpu_custom_call.1} parent=1 // pred_check_branch
      %77 = sbr.rel (0) target = $region49
    $region48: #{tpu_custom_call.1} parent=1 // pred_region
      %78 = dma.done [#allocation9], 16
    $region49: #{tpu_custom_call.1} parent=1 // pred_fallthru
      _
    %v80 = vld [vmem:[#allocation2] sm:$0x3]
    %v81 = vld [vmem:[#allocation5] sm:$0xf]
    %v82 = vld [vmem:[#allocation5 + $0x4] sm:$0xf]
    %v83 = vld [vmem:[#allocation5 + $0x8] sm:$0xf]
    %v84 = vld [vmem:[#allocation5 + $0xc] sm:$0xf]
    %v85 = vld [vmem:[#allocation7] sm:$0x1]
    %v86 = vld [vmem:[%s4] sm:$0xf]
    %v87 = vld [vmem:[%s4 + $0x4] sm:$0xf]
    %v88 = vld [vmem:[%s4 + $0x8] sm:$0xf]
    %v89 = vld [vmem:[%s4 + $0xc] sm:$0xf]
    %v90 = vld [vmem:[%s4 + $0x10] sm:$0xf]
    %v91 = vld [vmem:[%s4 + $0x14] sm:$0xf]
    %v92 = vld [vmem:[%s4 + $0x18] sm:$0xf]
    %v93 = vld [vmem:[%s4 + $0x1c] sm:$0xf]
    %v94 = vld [vmem:[#allocation8] sm:$0x1]
    %v95 = vld [vmem:[%s6] sm:$0xf]
    %v96 = vld [vmem:[%s6 + $0x4] sm:$0xf]
    %v97 = vld [vmem:[%s6 + $0x8] sm:$0xf]
    %v98 = vld [vmem:[%s6 + $0xc] sm:$0xf]
    %v99 = vld [vmem:[%s7] sm:$0x1]
    %v100 = vld [vmem:[%s0] sm:$0xf]
    %v102 = vlaneseq
    %v103 = vshrl.u32 %v102, 7
    %v104 = vsub.s32 0, %v103
    %v105 = vrot.slane %v85, %v104
    %vm107 = vcmask 31744
    %v109 = vsel %vm107, %v100, 0
    %vm111 = vcmask 1041408
    %v113 = vsel %vm111, %v80, 0
    %115 = vmatprep.subr.bf16.mxu0 0
    %116 = vmatpush1.bf16.msra.mxu0 0
    %117 = vmatprep.subr.bf16.mxu0 0
    %118 = vmatpush1.bf16.msra.mxu0 0
    %119 = vmatprep.subr.bf16.mxu0 0
    %120 = vmatpush1.bf16.msra.mxu0 0
    %121 = vmatprep.subr.bf16.mxu0 0
    %122 = vmatpush1.bf16.msra.mxu0 0
    %123 = vmatprep.subr.bf16.mxu0 0
    %124 = vmatpush1.bf16.msra.mxu0 0
    %125 = vmatprep.subr.bf16.mxu0 0
    %126 = vmatpush1.bf16.msra.mxu0 0
    %127 = vmatprep.subr.bf16.mxu0 0
    %128 = vmatpush1.bf16.msra.mxu0 0
    %129 = vmatprep.subr.bf16.mxu0 0
    %130 = vmatpush1.bf16.msra.mxu0 %v113
    %131 = vmatprep.subr.bf16.mxu0 0
    %132 = vmatpush2.bf16.msra.mxu0 0
    %133 = vmatprep.subr.bf16.mxu0 0
    %134 = vmatpush2.bf16.msra.mxu0 0
    %135 = vmatprep.subr.bf16.mxu0 0
    %136 = vmatpush2.bf16.msra.mxu0 0
    %137 = vmatprep.subr.bf16.mxu0 0
    %138 = vmatpush2.bf16.msra.mxu0 0
    %139 = vmatprep.subr.bf16.mxu0 0
    %140 = vmatpush2.bf16.msra.mxu0 0
    %141 = vmatprep.subr.bf16.mxu0 0
    %142 = vmatpush2.bf16.msra.mxu0 0
    %143 = vmatprep.subr.bf16.mxu0 0
    %144 = vmatpush2.bf16.msra.mxu0 0
    %145 = vmatprep.subr.bf16.mxu0 0
    %146 = vmatpush2.bf16.msra.mxu0 0
    %147 = vmatprep.mubr.bf16.mxu0 0
    %148 = vmatmul.mubr.bf16.gmra.mxu0 %v109
    %v149 = vpop.f32.mrf.mxu0
    %v150 = vadd.f32 %v105, %v149
    %v151 = vpop.f32.mrf.mxu0
    %v152 = vpop.f32.mrf.mxu0
    %v153 = vpop.f32.mrf.mxu0
    %154 = vdwg.mxu0
    %v159 = vunpack.c.l.b16 %v81
    %v160 = vunpack.c.l.b16 %v82
    %v161 = vunpack.c.l.b16 %v83
    %v162 = vunpack.c.l.b16 %v84
    %v163 = vpack.c.b16 %v160, %v159
    %v164 = vpack.c.b16 %v162, %v161
    %vm167 = vcmask 261120
    %v169 = vsel %vm167, 0, 0
    %171 = vmatprep.subr.bf16.mxu0 0
    %172 = vmatpush1.bf16.msra.mxu0 0
    %173 = vmatprep.subr.bf16.mxu0 0
    %174 = vmatpush1.bf16.msra.mxu0 0
    %175 = vmatprep.subr.bf16.mxu0 0
    %176 = vmatpush1.bf16.msra.mxu0 0
    %177 = vmatprep.subr.bf16.mxu0 0
    %178 = vmatpush1.bf16.msra.mxu0 0
    %179 = vmatprep.subr.bf16.mxu0 0
    %180 = vmatpush1.bf16.msra.mxu0 0
    %181 = vmatprep.subr.bf16.mxu0 0
    %182 = vmatpush1.bf16.msra.mxu0 0
    %183 = vmatprep.subr.bf16.mxu0 0
    %184 = vmatpush1.bf16.msra.mxu0 %v164
    %185 = vmatprep.subr.bf16.mxu0 0
    %186 = vmatpush1.bf16.msra.mxu0 %v163
    %187 = vmatprep.subr.bf16.mxu0 0
    %188 = vmatpush2.bf16.msra.mxu0 0
    %189 = vmatprep.subr.bf16.mxu0 0
    %190 = vmatpush2.bf16.msra.mxu0 0
    %191 = vmatprep.subr.bf16.mxu0 0
    %192 = vmatpush2.bf16.msra.mxu0 0
    %193 = vmatprep.subr.bf16.mxu0 0
    %194 = vmatpush2.bf16.msra.mxu0 0
    %195 = vmatprep.subr.bf16.mxu0 0
    %196 = vmatpush2.bf16.msra.mxu0 0
    %197 = vmatprep.subr.bf16.mxu0 0
    %198 = vmatpush2.bf16.msra.mxu0 0
    %199 = vmatprep.subr.bf16.mxu0 0
    %200 = vmatpush2.bf16.msra.mxu0 0
    %201 = vmatprep.subr.bf16.mxu0 0
    %202 = vmatpush2.bf16.msra.mxu0 0
    %203 = vmatprep.mubr.bf16.mxu0 0
    %204 = vmatmul.mubr.bf16.gmra.mxu0 %v169
    %v205 = vpop.f32.mrf.mxu0
    %v206 = vadd.f32 0.0, %v205
    %v207 = vpop.f32.mrf.mxu0
    %v208 = vpop.f32.mrf.mxu0
    %v209 = vpop.f32.mrf.mxu0
    %210 = vdwg.mxu0
    %v211 = vadd.f32 %v150, %v206
    %v212 = vxor.u32 %v211, 2147483648
    %v213 = vmul.f32 %v212, 1.442695
    %v214 = vpow.pop %v213
    %v215 = vadd.f32 %v214, 1.0
    %v216 = vrcp.pop %v215
    %v217 = vmul.f32 1.0, %v216
    %v218 = vmul.f32 %v217, 2.0
    %v219 = vsub.f32 %v218, 1.0
    %v220 = vmul.f32 %v217, 0.0
    %222 = vrot.lane.b32.xlu0 %v219, 32
    %v223 = vpop.permute.xlu0 %222
    %v225 = vmul.f32 %v217, %v223
    %227 = vrot.lane.b32.xlu0 %v225, 32
    %v228 = vpop.permute.xlu0 %227
    %v230 = vadd.f32 %v220, %v228
    %v231 = vtanh.pop %v230
    %233 = vrot.lane.b32.xlu0 %v231, 32
    %v234 = vpop.permute.xlu0 %233
    %v236 = vmul.f32 %v217, %v234
    %v237 = vpack.c.bf16 %v236, %v236
    %239 = vrot.lane.b32.xlu0 %v237, 64
    %v240 = vpop.permute.xlu0 %239
    %v242 = vsel %vm167, %v240, 0
    %v251 = vunpack.c.l.b16 %v86
    %v252 = vunpack.c.l.b16 %v87
    %v253 = vunpack.c.l.b16 %v88
    %v254 = vunpack.c.l.b16 %v89
    %v255 = vunpack.c.l.b16 %v90
    %v256 = vunpack.c.l.b16 %v91
    %v257 = vunpack.c.l.b16 %v92
    %v258 = vunpack.c.l.b16 %v93
    %v259 = vpack.c.b16 %v252, %v251
    %v260 = vpack.c.b16 %v254, %v253
    %v261 = vpack.c.b16 %v256, %v255
    %v262 = vpack.c.b16 %v258, %v257
    %vm267 = vcmask 523264
    %v268 = vsel %vm267, %v242, 0
    %270 = vmatprep.subr.bf16.mxu0 0
    %271 = vmatpush1.bf16.msra.mxu0 0
    %272 = vmatprep.subr.bf16.mxu0 0
    %273 = vmatpush1.bf16.msra.mxu0 0
    %274 = vmatprep.subr.bf16.mxu0 0
    %275 = vmatpush1.bf16.msra.mxu0 0
    %276 = vmatprep.subr.bf16.mxu0 0
    %277 = vmatpush1.bf16.msra.mxu0 0
    %278 = vmatprep.subr.bf16.mxu0 0
    %279 = vmatpush1.bf16.msra.mxu0 %v262
    %280 = vmatprep.subr.bf16.mxu0 0
    %281 = vmatpush1.bf16.msra.mxu0 %v261
    %282 = vmatprep.subr.bf16.mxu0 0
    %283 = vmatpush1.bf16.msra.mxu0 %v260
    %284 = vmatprep.subr.bf16.mxu0 0
    %285 = vmatpush1.bf16.msra.mxu0 %v259
    %286 = vmatprep.subr.bf16.mxu0 0
    %287 = vmatpush2.bf16.msra.mxu0 0
    %288 = vmatprep.subr.bf16.mxu0 0
    %289 = vmatpush2.bf16.msra.mxu0 0
    %290 = vmatprep.subr.bf16.mxu0 0
    %291 = vmatpush2.bf16.msra.mxu0 0
    %292 = vmatprep.subr.bf16.mxu0 0
    %293 = vmatpush2.bf16.msra.mxu0 0
    %294 = vmatprep.subr.bf16.mxu0 0
    %295 = vmatpush2.bf16.msra.mxu0 0
    %296 = vmatprep.subr.bf16.mxu0 0
    %297 = vmatpush2.bf16.msra.mxu0 0
    %298 = vmatprep.subr.bf16.mxu0 0
    %299 = vmatpush2.bf16.msra.mxu0 0
    %300 = vmatprep.subr.bf16.mxu0 0
    %301 = vmatpush2.bf16.msra.mxu0 0
    %302 = vmatprep.mubr.bf16.mxu0 0
    %303 = vmatmul.mubr.bf16.gmra.mxu0 %v268
    %v304 = vpop.f32.mrf.mxu0
    %v305 = vadd.f32 %v94, %v304
    %v306 = vpop.f32.mrf.mxu0
    %v307 = vpop.f32.mrf.mxu0
    %v308 = vpop.f32.mrf.mxu0
    %309 = vdwg.mxu0
    %v310 = vxor.u32 %v305, 2147483648
    %v311 = vmul.f32 %v310, 1.442695
    %v312 = vpow.pop %v311
    %v313 = vadd.f32 %v312, 1.0
    %v314 = vrcp.pop %v313
    %v315 = vmul.f32 1.0, %v314
    %v316 = vmul.f32 %v315, 2.0
    %v317 = vsub.f32 %v316, 1.0
    %v318 = vmul.f32 %v315, 0.0
    %320 = vrot.lane.b32.xlu0 %v317, 32
    %v321 = vpop.permute.xlu0 %320
    %v323 = vmul.f32 %v315, %v321
    %325 = vrot.lane.b32.xlu0 %v323, 32
    %v326 = vpop.permute.xlu0 %325
    %v328 = vadd.f32 %v318, %v326
    %v329 = vtanh.pop %v328
    %331 = vrot.lane.b32.xlu0 %v329, 32
    %v332 = vpop.permute.xlu0 %331
    %v334 = vmul.f32 %v315, %v332
    %v335 = vpack.c.bf16 %v334, %v334
    %v336 = vsel %vm167, %v240, 0
    %338 = vmatprep.subr.bf16.mxu0 0
    %339 = vmatpush1.bf16.msra.mxu0 0
    %340 = vmatprep.subr.bf16.mxu0 0
    %341 = vmatpush1.bf16.msra.mxu0 0
    %342 = vmatprep.subr.bf16.mxu0 0
    %343 = vmatpush1.bf16.msra.mxu0 0
    %344 = vmatprep.subr.bf16.mxu0 0
    %345 = vmatpush1.bf16.msra.mxu0 0
    %346 = vmatprep.subr.bf16.mxu0 0
    %347 = vmatpush1.bf16.msra.mxu0 0
    %348 = vmatprep.subr.bf16.mxu0 0
    %349 = vmatpush1.bf16.msra.mxu0 0
    %350 = vmatprep.subr.bf16.mxu0 0
    %351 = vmatpush1.bf16.msra.mxu0 %v164
    %352 = vmatprep.subr.bf16.mxu0 0
    %353 = vmatpush1.bf16.msra.mxu0 %v163
    %354 = vmatprep.subr.bf16.mxu0 0
    %355 = vmatpush2.bf16.msra.mxu0 0
    %356 = vmatprep.subr.bf16.mxu0 0
    %357 = vmatpush2.bf16.msra.mxu0 0
    %358 = vmatprep.subr.bf16.mxu0 0
    %359 = vmatpush2.bf16.msra.mxu0 0
    %360 = vmatprep.subr.bf16.mxu0 0
    %361 = vmatpush2.bf16.msra.mxu0 0
    %362 = vmatprep.subr.bf16.mxu0 0
    %363 = vmatpush2.bf16.msra.mxu0 0
    %364 = vmatprep.subr.bf16.mxu0 0
    %365 = vmatpush2.bf16.msra.mxu0 0
    %366 = vmatprep.subr.bf16.mxu0 0
    %367 = vmatpush2.bf16.msra.mxu0 0
    %368 = vmatprep.subr.bf16.mxu0 0
    %369 = vmatpush2.bf16.msra.mxu0 0
    %370 = vmatprep.mubr.bf16.mxu0 0
    %371 = vmatmul.mubr.bf16.gmra.mxu0 %v336
    %v372 = vpop.f32.mrf.mxu0
    %v373 = vadd.f32 0.0, %v372
    %v374 = vpop.f32.mrf.mxu0
    %v375 = vpop.f32.mrf.mxu0
    %v376 = vpop.f32.mrf.mxu0
    %377 = vdwg.mxu0
    %v379 = vrot.slane %v373, 7
    %v381 = vadd.f32 %v150, %v379
    %v382 = vxor.u32 %v381, 2147483648
    %v383 = vmul.f32 %v382, 1.442695
    %v384 = vpow.pop %v383
    %v385 = vadd.f32 %v384, 1.0
    %v386 = vrcp.pop %v385
    %v387 = vmul.f32 1.0, %v386
    %v388 = vmul.f32 %v387, 2.0
    %v389 = vsub.f32 %v388, 1.0
    %v391 = vrot.slane %v230, 7
    %v393 = vmul.f32 %v387, %v391
    %395 = vrot.lane.b32.xlu0 %v389, 32
    %v396 = vpop.permute.xlu0 %395
    %v398 = vmul.f32 %v387, %v396
    %400 = vrot.lane.b32.xlu0 %v398, 32
    %v401 = vpop.permute.xlu0 %400
    %v403 = vadd.f32 %v393, %v401
    %v404 = vtanh.pop %v403
    %406 = vrot.lane.b32.xlu0 %v404, 32
    %v407 = vpop.permute.xlu0 %406
    %v409 = vmul.f32 %v387, %v407
    %v410 = vpack.c.bf16 %v409, %v409
    %412 = vrot.lane.b32.xlu0 %v410, 64
    %v413 = vpop.permute.xlu0 %412
    %v415 = vshll.u32 %v335, 16
    %417 = vrot.lane.b32.xlu0 %v415, 96
    %v418 = vpop.permute.xlu0 %417
    %v421 = vsel %vm167, %v413, %v418
    %v422 = vshrl.u32 %v421, 16
    %v425 = vsel %vm267, %v422, 0
    %427 = vmatprep.subr.bf16.mxu0 0
    %428 = vmatpush1.bf16.msra.mxu0 0
    %429 = vmatprep.subr.bf16.mxu0 0
    %430 = vmatpush1.bf16.msra.mxu0 0
    %431 = vmatprep.subr.bf16.mxu0 0
    %432 = vmatpush1.bf16.msra.mxu0 0
    %433 = vmatprep.subr.bf16.mxu0 0
    %434 = vmatpush1.bf16.msra.mxu0 0
    %435 = vmatprep.subr.bf16.mxu0 0
    %436 = vmatpush1.bf16.msra.mxu0 %v262
    %437 = vmatprep.subr.bf16.mxu0 0
    %438 = vmatpush1.bf16.msra.mxu0 %v261
    %439 = vmatprep.subr.bf16.mxu0 0
    %440 = vmatpush1.bf16.msra.mxu0 %v260
    %441 = vmatprep.subr.bf16.mxu0 0
    %442 = vmatpush1.bf16.msra.mxu0 %v259
    %443 = vmatprep.subr.bf16.mxu0 0
    %444 = vmatpush2.bf16.msra.mxu0 0
    %445 = vmatprep.subr.bf16.mxu0 0
    %446 = vmatpush2.bf16.msra.mxu0 0
    %447 = vmatprep.subr.bf16.mxu0 0
    %448 = vmatpush2.bf16.msra.mxu0 0
    %449 = vmatprep.subr.bf16.mxu0 0
    %450 = vmatpush2.bf16.msra.mxu0 0
    %451 = vmatprep.subr.bf16.mxu0 0
    %452 = vmatpush2.bf16.msra.mxu0 0
    %453 = vmatprep.subr.bf16.mxu0 0
    %454 = vmatpush2.bf16.msra.mxu0 0
    %455 = vmatprep.subr.bf16.mxu0 0
    %456 = vmatpush2.bf16.msra.mxu0 0
    %457 = vmatprep.subr.bf16.mxu0 0
    %458 = vmatpush2.bf16.msra.mxu0 0
    %459 = vmatprep.mubr.bf16.mxu0 0
    %460 = vmatmul.mubr.bf16.gmra.mxu0 %v425
    %v461 = vpop.f32.mrf.mxu0
    %v462 = vadd.f32 %v94, %v461
    %v463 = vpop.f32.mrf.mxu0
    %v464 = vpop.f32.mrf.mxu0
    %v465 = vpop.f32.mrf.mxu0
    %466 = vdwg.mxu0
    %v467 = vxor.u32 %v462, 2147483648
    %v468 = vmul.f32 %v467, 1.442695
    %v469 = vpow.pop %v468
    %v470 = vadd.f32 %v469, 1.0
    %v471 = vrcp.pop %v470
    %v472 = vmul.f32 1.0, %v471
    %v473 = vmul.f32 %v472, 2.0
    %v474 = vsub.f32 %v473, 1.0
    %v475 = vmul.f32 %v472, %v328
    %477 = vrot.lane.b32.xlu0 %v474, 32
    %v478 = vpop.permute.xlu0 %477
    %v480 = vmul.f32 %v472, %v478
    %482 = vrot.lane.b32.xlu0 %v480, 32
    %v483 = vpop.permute.xlu0 %482
    %v485 = vadd.f32 %v475, %v483
    %v486 = vtanh.pop %v485
    %488 = vrot.lane.b32.xlu0 %v486, 32
    %v489 = vpop.permute.xlu0 %488
    %v491 = vmul.f32 %v472, %v489
    %v492 = vpack.c.bf16 %v491, %v491
    %v494 = vshrl.u32 %v410, 16
    %496 = vrot.lane.b32.xlu0 %v494, 64
    %v497 = vpop.permute.xlu0 %496
    %v499 = vsel %vm167, %v497, 0
    %501 = vmatprep.subr.bf16.mxu0 0
    %502 = vmatpush1.bf16.msra.mxu0 0
    %503 = vmatprep.subr.bf16.mxu0 0
    %504 = vmatpush1.bf16.msra.mxu0 0
    %505 = vmatprep.subr.bf16.mxu0 0
    %506 = vmatpush1.bf16.msra.mxu0 0
    %507 = vmatprep.subr.bf16.mxu0 0
    %508 = vmatpush1.bf16.msra.mxu0 0
    %509 = vmatprep.subr.bf16.mxu0 0
    %510 = vmatpush1.bf16.msra.mxu0 0
    %511 = vmatprep.subr.bf16.mxu0 0
    %512 = vmatpush1.bf16.msra.mxu0 0
    %513 = vmatprep.subr.bf16.mxu0 0
    %514 = vmatpush1.bf16.msra.mxu0 %v164
    %515 = vmatprep.subr.bf16.mxu0 0
    %516 = vmatpush1.bf16.msra.mxu0 %v163
    %517 = vmatprep.subr.bf16.mxu0 0
    %518 = vmatpush2.bf16.msra.mxu0 0
    %519 = vmatprep.subr.bf16.mxu0 0
    %520 = vmatpush2.bf16.msra.mxu0 0
    %521 = vmatprep.subr.bf16.mxu0 0
    %522 = vmatpush2.bf16.msra.mxu0 0
    %523 = vmatprep.subr.bf16.mxu0 0
    %524 = vmatpush2.bf16.msra.mxu0 0
    %525 = vmatprep.subr.bf16.mxu0 0
    %526 = vmatpush2.bf16.msra.mxu0 0
    %527 = vmatprep.subr.bf16.mxu0 0
    %528 = vmatpush2.bf16.msra.mxu0 0
    %529 = vmatprep.subr.bf16.mxu0 0
    %530 = vmatpush2.bf16.msra.mxu0 0
    %531 = vmatprep.subr.bf16.mxu0 0
    %532 = vmatpush2.bf16.msra.mxu0 0
    %533 = vmatprep.mubr.bf16.mxu0 0
    %534 = vmatmul.mubr.bf16.gmra.mxu0 %v499
    %v535 = vpop.f32.mrf.mxu0
    %v536 = vadd.f32 0.0, %v535
    %v537 = vpop.f32.mrf.mxu0
    %v538 = vpop.f32.mrf.mxu0
    %v539 = vpop.f32.mrf.mxu0
    %540 = vdwg.mxu0
    %v542 = vrot.slane %v536, 6
    %v544 = vadd.f32 %v150, %v542
    %v545 = vxor.u32 %v544, 2147483648
    %v546 = vmul.f32 %v545, 1.442695
    %v547 = vpow.pop %v546
    %v548 = vadd.f32 %v547, 1.0
    %v549 = vrcp.pop %v548
    %v550 = vmul.f32 1.0, %v549
    %v551 = vmul.f32 %v550, 2.0
    %v552 = vsub.f32 %v551, 1.0
    %v554 = vrot.slane %v403, 7
    %v556 = vmul.f32 %v550, %v554
    %558 = vrot.lane.b32.xlu0 %v552, 32
    %v559 = vpop.permute.xlu0 %558
    %v561 = vmul.f32 %v550, %v559
    %563 = vrot.lane.b32.xlu0 %v561, 32
    %v564 = vpop.permute.xlu0 %563
    %v566 = vadd.f32 %v556, %v564
    %v567 = vtanh.pop %v566
    %569 = vrot.lane.b32.xlu0 %v567, 32
    %v570 = vpop.permute.xlu0 %569
    %v572 = vmul.f32 %v550, %v570
    %v573 = vpack.c.bf16 %v572, %v572
    %575 = vrot.lane.b32.xlu0 %v573, 64
    %v576 = vpop.permute.xlu0 %575
    %v578 = vrot.slane %v492, 7
    %579 = vrot.lane.b32.xlu0 %v578, 96
    %v580 = vpop.permute.xlu0 %579
    %v583 = vsel %vm167, %v576, %v580
    %v585 = vrot.slane %v583, 1
    %v587 = vsel %vm267, %v585, 0
    %589 = vmatprep.subr.bf16.mxu0 0
    %590 = vmatpush1.bf16.msra.mxu0 0
    %591 = vmatprep.subr.bf16.mxu0 0
    %592 = vmatpush1.bf16.msra.mxu0 0
    %593 = vmatprep.subr.bf16.mxu0 0
    %594 = vmatpush1.bf16.msra.mxu0 0
    %595 = vmatprep.subr.bf16.mxu0 0
    %596 = vmatpush1.bf16.msra.mxu0 0
    %597 = vmatprep.subr.bf16.mxu0 0
    %598 = vmatpush1.bf16.msra.mxu0 %v262
    %599 = vmatprep.subr.bf16.mxu0 0
    %600 = vmatpush1.bf16.msra.mxu0 %v261
    %601 = vmatprep.subr.bf16.mxu0 0
    %602 = vmatpush1.bf16.msra.mxu0 %v260
    %603 = vmatprep.subr.bf16.mxu0 0
    %604 = vmatpush1.bf16.msra.mxu0 %v259
    %605 = vmatprep.subr.bf16.mxu0 0
    %606 = vmatpush2.bf16.msra.mxu0 0
    %607 = vmatprep.subr.bf16.mxu0 0
    %608 = vmatpush2.bf16.msra.mxu0 0
    %609 = vmatprep.subr.bf16.mxu0 0
    %610 = vmatpush2.bf16.msra.mxu0 0
    %611 = vmatprep.subr.bf16.mxu0 0
    %612 = vmatpush2.bf16.msra.mxu0 0
    %613 = vmatprep.subr.bf16.mxu0 0
    %614 = vmatpush2.bf16.msra.mxu0 0
    %615 = vmatprep.subr.bf16.mxu0 0
    %616 = vmatpush2.bf16.msra.mxu0 0
    %617 = vmatprep.subr.bf16.mxu0 0
    %618 = vmatpush2.bf16.msra.mxu0 0
    %619 = vmatprep.subr.bf16.mxu0 0
    %620 = vmatpush2.bf16.msra.mxu0 0
    %621 = vmatprep.mubr.bf16.mxu0 0
    %622 = vmatmul.mubr.bf16.gmra.mxu0 %v587
    %v623 = vpop.f32.mrf.mxu0
    %v624 = vadd.f32 %v94, %v623
    %v625 = vpop.f32.mrf.mxu0
    %v626 = vpop.f32.mrf.mxu0
    %v627 = vpop.f32.mrf.mxu0
    %628 = vdwg.mxu0
    %v629 = vxor.u32 %v624, 2147483648
    %v630 = vmul.f32 %v629, 1.442695
    %v631 = vpow.pop %v630
    %v632 = vadd.f32 %v631, 1.0
    %v633 = vrcp.pop %v632
    %v634 = vmul.f32 1.0, %v633
    %v635 = vmul.f32 %v634, 2.0
    %v636 = vsub.f32 %v635, 1.0
    %v637 = vmul.f32 %v634, %v485
    %639 = vrot.lane.b32.xlu0 %v636, 32
    %v640 = vpop.permute.xlu0 %639
    %v642 = vmul.f32 %v634, %v640
    %644 = vrot.lane.b32.xlu0 %v642, 32
    %v645 = vpop.permute.xlu0 %644
    %v647 = vadd.f32 %v637, %v645
    %v648 = vtanh.pop %v647
    %650 = vrot.lane.b32.xlu0 %v648, 32
    %v651 = vpop.permute.xlu0 %650
    %v653 = vmul.f32 %v634, %v651
    %v654 = vpack.c.bf16 %v653, %v653
    %v655 = vrot.slane %v573, 1
    %656 = vrot.lane.b32.xlu0 %v655, 64
    %v657 = vpop.permute.xlu0 %656
    %v659 = vsel %vm167, %v657, 0
    %661 = vmatprep.subr.bf16.mxu0 0
    %662 = vmatpush1.bf16.msra.mxu0 0
    %663 = vmatprep.subr.bf16.mxu0 0
    %664 = vmatpush1.bf16.msra.mxu0 0
    %665 = vmatprep.subr.bf16.mxu0 0
    %666 = vmatpush1.bf16.msra.mxu0 0
    %667 = vmatprep.subr.bf16.mxu0 0
    %668 = vmatpush1.bf16.msra.mxu0 0
    %669 = vmatprep.subr.bf16.mxu0 0
    %670 = vmatpush1.bf16.msra.mxu0 0
    %671 = vmatprep.subr.bf16.mxu0 0
    %672 = vmatpush1.bf16.msra.mxu0 0
    %673 = vmatprep.subr.bf16.mxu0 0
    %674 = vmatpush1.bf16.msra.mxu0 %v164
    %675 = vmatprep.subr.bf16.mxu0 0
    %676 = vmatpush1.bf16.msra.mxu0 %v163
    %677 = vmatprep.subr.bf16.mxu0 0
    %678 = vmatpush2.bf16.msra.mxu0 0
    %679 = vmatprep.subr.bf16.mxu0 0
    %680 = vmatpush2.bf16.msra.mxu0 0
    %681 = vmatprep.subr.bf16.mxu0 0
    %682 = vmatpush2.bf16.msra.mxu0 0
    %683 = vmatprep.subr.bf16.mxu0 0
    %684 = vmatpush2.bf16.msra.mxu0 0
    %685 = vmatprep.subr.bf16.mxu0 0
    %686 = vmatpush2.bf16.msra.mxu0 0
    %687 = vmatprep.subr.bf16.mxu0 0
    %688 = vmatpush2.bf16.msra.mxu0 0
    %689 = vmatprep.subr.bf16.mxu0 0
    %690 = vmatpush2.bf16.msra.mxu0 0
    %691 = vmatprep.subr.bf16.mxu0 0
    %692 = vmatpush2.bf16.msra.mxu0 0
    %693 = vmatprep.mubr.bf16.mxu0 0
    %694 = vmatmul.mubr.bf16.gmra.mxu0 %v659
    %v695 = vpop.f32.mrf.mxu0
    %v696 = vadd.f32 0.0, %v695
    %v697 = vpop.f32.mrf.mxu0
    %v698 = vpop.f32.mrf.mxu0
    %v699 = vpop.f32.mrf.mxu0
    %700 = vdwg.mxu0
    %v702 = vrot.slane %v696, 5
    %v704 = vadd.f32 %v150, %v702
    %v705 = vxor.u32 %v704, 2147483648
    %v706 = vmul.f32 %v705, 1.442695
    %v707 = vpow.pop %v706
    %v708 = vadd.f32 %v707, 1.0
    %v709 = vrcp.pop %v708
    %v710 = vmul.f32 1.0, %v709
    %v711 = vmul.f32 %v710, 2.0
    %v712 = vsub.f32 %v711, 1.0
    %v714 = vrot.slane %v566, 7
    %v716 = vmul.f32 %v710, %v714
    %718 = vrot.lane.b32.xlu0 %v712, 32
    %v719 = vpop.permute.xlu0 %718
    %v721 = vmul.f32 %v710, %v719
    %723 = vrot.lane.b32.xlu0 %v721, 32
    %v724 = vpop.permute.xlu0 %723
    %v726 = vadd.f32 %v716, %v724
    %v727 = vtanh.pop %v726
    %729 = vrot.lane.b32.xlu0 %v727, 32
    %v730 = vpop.permute.xlu0 %729
    %v732 = vmul.f32 %v710, %v730
    %v733 = vpack.c.bf16 %v732, %v732
    %735 = vrot.lane.b32.xlu0 %v733, 64
    %v736 = vpop.permute.xlu0 %735
    %v738 = vshll.u32 %v654, 16
    %v740 = vrot.slane %v738, 7
    %741 = vrot.lane.b32.xlu0 %v740, 96
    %v742 = vpop.permute.xlu0 %741
    %v745 = vsel %vm167, %v736, %v742
    %v746 = vshrl.u32 %v745, 16
    %v748 = vrot.slane %v746, 1
    %v750 = vsel %vm267, %v748, 0
    %752 = vmatprep.subr.bf16.mxu0 0
    %753 = vmatpush1.bf16.msra.mxu0 0
    %754 = vmatprep.subr.bf16.mxu0 0
    %755 = vmatpush1.bf16.msra.mxu0 0
    %756 = vmatprep.subr.bf16.mxu0 0
    %757 = vmatpush1.bf16.msra.mxu0 0
    %758 = vmatprep.subr.bf16.mxu0 0
    %759 = vmatpush1.bf16.msra.mxu0 0
    %760 = vmatprep.subr.bf16.mxu0 0
    %761 = vmatpush1.bf16.msra.mxu0 %v262
    %762 = vmatprep.subr.bf16.mxu0 0
    %763 = vmatpush1.bf16.msra.mxu0 %v261
    %764 = vmatprep.subr.bf16.mxu0 0
    %765 = vmatpush1.bf16.msra.mxu0 %v260
    %766 = vmatprep.subr.bf16.mxu0 0
    %767 = vmatpush1.bf16.msra.mxu0 %v259
    %768 = vmatprep.subr.bf16.mxu0 0
    %769 = vmatpush2.bf16.msra.mxu0 0
    %770 = vmatprep.subr.bf16.mxu0 0
    %771 = vmatpush2.bf16.msra.mxu0 0
    %772 = vmatprep.subr.bf16.mxu0 0
    %773 = vmatpush2.bf16.msra.mxu0 0
    %774 = vmatprep.subr.bf16.mxu0 0
    %775 = vmatpush2.bf16.msra.mxu0 0
    %776 = vmatprep.subr.bf16.mxu0 0
    %777 = vmatpush2.bf16.msra.mxu0 0
    %778 = vmatprep.subr.bf16.mxu0 0
    %779 = vmatpush2.bf16.msra.mxu0 0
    %780 = vmatprep.subr.bf16.mxu0 0
    %781 = vmatpush2.bf16.msra.mxu0 0
    %782 = vmatprep.subr.bf16.mxu0 0
    %783 = vmatpush2.bf16.msra.mxu0 0
    %784 = vmatprep.mubr.bf16.mxu0 0
    %785 = vmatmul.mubr.bf16.gmra.mxu0 %v750
    %v786 = vpop.f32.mrf.mxu0
    %v787 = vadd.f32 %v94, %v786
    %v788 = vpop.f32.mrf.mxu0
    %v789 = vpop.f32.mrf.mxu0
    %v790 = vpop.f32.mrf.mxu0
    %791 = vdwg.mxu0
    %v792 = vxor.u32 %v787, 2147483648
    %v793 = vmul.f32 %v792, 1.442695
    %v794 = vpow.pop %v793
    %v795 = vadd.f32 %v794, 1.0
    %v796 = vrcp.pop %v795
    %v797 = vmul.f32 1.0, %v796
    %v798 = vmul.f32 %v797, 2.0
    %v799 = vsub.f32 %v798, 1.0
    %v800 = vmul.f32 %v797, %v647
    %802 = vrot.lane.b32.xlu0 %v799, 32
    %v803 = vpop.permute.xlu0 %802
    %v805 = vmul.f32 %v797, %v803
    %807 = vrot.lane.b32.xlu0 %v805, 32
    %v808 = vpop.permute.xlu0 %807
    %v810 = vadd.f32 %v800, %v808
    %v811 = vtanh.pop %v810
    %813 = vrot.lane.b32.xlu0 %v811, 32
    %v814 = vpop.permute.xlu0 %813
    %v816 = vmul.f32 %v797, %v814
    %v817 = vpack.c.bf16 %v816, %v816
    %v819 = vshrl.u32 %v733, 16
    %v821 = vrot.slane %v819, 1
    %822 = vrot.lane.b32.xlu0 %v821, 64
    %v823 = vpop.permute.xlu0 %822
    %v825 = vsel %vm167, %v823, 0
    %827 = vmatprep.subr.bf16.mxu0 0
    %828 = vmatpush1.bf16.msra.mxu0 0
    %829 = vmatprep.subr.bf16.mxu0 0
    %830 = vmatpush1.bf16.msra.mxu0 0
    %831 = vmatprep.subr.bf16.mxu0 0
    %832 = vmatpush1.bf16.msra.mxu0 0
    %833 = vmatprep.subr.bf16.mxu0 0
    %834 = vmatpush1.bf16.msra.mxu0 0
    %835 = vmatprep.subr.bf16.mxu0 0
    %836 = vmatpush1.bf16.msra.mxu0 0
    %837 = vmatprep.subr.bf16.mxu0 0
    %838 = vmatpush1.bf16.msra.mxu0 0
    %839 = vmatprep.subr.bf16.mxu0 0
    %840 = vmatpush1.bf16.msra.mxu0 %v164
    %841 = vmatprep.subr.bf16.mxu0 0
    %842 = vmatpush1.bf16.msra.mxu0 %v163
    %843 = vmatprep.subr.bf16.mxu0 0
    %844 = vmatpush2.bf16.msra.mxu0 0
    %845 = vmatprep.subr.bf16.mxu0 0
    %846 = vmatpush2.bf16.msra.mxu0 0
    %847 = vmatprep.subr.bf16.mxu0 0
    %848 = vmatpush2.bf16.msra.mxu0 0
    %849 = vmatprep.subr.bf16.mxu0 0
    %850 = vmatpush2.bf16.msra.mxu0 0
    %851 = vmatprep.subr.bf16.mxu0 0
    %852 = vmatpush2.bf16.msra.mxu0 0
    %853 = vmatprep.subr.bf16.mxu0 0
    %854 = vmatpush2.bf16.msra.mxu0 0
    %855 = vmatprep.subr.bf16.mxu0 0
    %856 = vmatpush2.bf16.msra.mxu0 0
    %857 = vmatprep.subr.bf16.mxu0 0
    %858 = vmatpush2.bf16.msra.mxu0 0
    %859 = vmatprep.mubr.bf16.mxu0 0
    %860 = vmatmul.mubr.bf16.gmra.mxu0 %v825
    %v861 = vpop.f32.mrf.mxu0
    %v862 = vadd.f32 0.0, %v861
    %v863 = vpop.f32.mrf.mxu0
    %v864 = vpop.f32.mrf.mxu0
    %v865 = vpop.f32.mrf.mxu0
    %866 = vdwg.mxu0
    %v868 = vrot.slane %v862, 4
    %v870 = vadd.f32 %v150, %v868
    %v871 = vxor.u32 %v870, 2147483648
    %v872 = vmul.f32 %v871, 1.442695
    %v873 = vpow.pop %v872
    %v874 = vadd.f32 %v873, 1.0
    %v875 = vrcp.pop %v874
    %v876 = vmul.f32 1.0, %v875
    %v877 = vmul.f32 %v876, 2.0
    %v878 = vsub.f32 %v877, 1.0
    %v880 = vrot.slane %v726, 7
    %v882 = vmul.f32 %v876, %v880
    %884 = vrot.lane.b32.xlu0 %v878, 32
    %v885 = vpop.permute.xlu0 %884
    %v887 = vmul.f32 %v876, %v885
    %889 = vrot.lane.b32.xlu0 %v887, 32
    %v890 = vpop.permute.xlu0 %889
    %v892 = vadd.f32 %v882, %v890
    %v893 = vtanh.pop %v892
    %895 = vrot.lane.b32.xlu0 %v893, 32
    %v896 = vpop.permute.xlu0 %895
    %v898 = vmul.f32 %v876, %v896
    %v899 = vpack.c.bf16 %v898, %v898
    %901 = vrot.lane.b32.xlu0 %v899, 64
    %v902 = vpop.permute.xlu0 %901
    %v904 = vrot.slane %v817, 6
    %905 = vrot.lane.b32.xlu0 %v904, 96
    %v906 = vpop.permute.xlu0 %905
    %v909 = vsel %vm167, %v902, %v906
    %v911 = vrot.slane %v909, 2
    %v913 = vsel %vm267, %v911, 0
    %915 = vmatprep.subr.bf16.mxu0 0
    %916 = vmatpush1.bf16.msra.mxu0 0
    %917 = vmatprep.subr.bf16.mxu0 0
    %918 = vmatpush1.bf16.msra.mxu0 0
    %919 = vmatprep.subr.bf16.mxu0 0
    %920 = vmatpush1.bf16.msra.mxu0 0
    %921 = vmatprep.subr.bf16.mxu0 0
    %922 = vmatpush1.bf16.msra.mxu0 0
    %923 = vmatprep.subr.bf16.mxu0 0
    %924 = vmatpush1.bf16.msra.mxu0 %v262
    %925 = vmatprep.subr.bf16.mxu0 0
    %926 = vmatpush1.bf16.msra.mxu0 %v261
    %927 = vmatprep.subr.bf16.mxu0 0
    %928 = vmatpush1.bf16.msra.mxu0 %v260
    %929 = vmatprep.subr.bf16.mxu0 0
    %930 = vmatpush1.bf16.msra.mxu0 %v259
    %931 = vmatprep.subr.bf16.mxu0 0
    %932 = vmatpush2.bf16.msra.mxu0 0
    %933 = vmatprep.subr.bf16.mxu0 0
    %934 = vmatpush2.bf16.msra.mxu0 0
    %935 = vmatprep.subr.bf16.mxu0 0
    %936 = vmatpush2.bf16.msra.mxu0 0
    %937 = vmatprep.subr.bf16.mxu0 0
    %938 = vmatpush2.bf16.msra.mxu0 0
    %939 = vmatprep.subr.bf16.mxu0 0
    %940 = vmatpush2.bf16.msra.mxu0 0
    %941 = vmatprep.subr.bf16.mxu0 0
    %942 = vmatpush2.bf16.msra.mxu0 0
    %943 = vmatprep.subr.bf16.mxu0 0
    %944 = vmatpush2.bf16.msra.mxu0 0
    %945 = vmatprep.subr.bf16.mxu0 0
    %946 = vmatpush2.bf16.msra.mxu0 0
    %947 = vmatprep.mubr.bf16.mxu0 0
    %948 = vmatmul.mubr.bf16.gmra.mxu0 %v913
    %v949 = vpop.f32.mrf.mxu0
    %v950 = vadd.f32 %v94, %v949
    %v951 = vpop.f32.mrf.mxu0
    %v952 = vpop.f32.mrf.mxu0
    %v953 = vpop.f32.mrf.mxu0
    %954 = vdwg.mxu0
    %v955 = vxor.u32 %v950, 2147483648
    %v956 = vmul.f32 %v955, 1.442695
    %v957 = vpow.pop %v956
    %v958 = vadd.f32 %v957, 1.0
    %v959 = vrcp.pop %v958
    %v960 = vmul.f32 1.0, %v959
    %v961 = vmul.f32 %v960, 2.0
    %v962 = vsub.f32 %v961, 1.0
    %v963 = vmul.f32 %v960, %v810
    %965 = vrot.lane.b32.xlu0 %v962, 32
    %v966 = vpop.permute.xlu0 %965
    %v968 = vmul.f32 %v960, %v966
    %970 = vrot.lane.b32.xlu0 %v968, 32
    %v971 = vpop.permute.xlu0 %970
    %v973 = vadd.f32 %v963, %v971
    %v974 = vtanh.pop %v973
    %976 = vrot.lane.b32.xlu0 %v974, 32
    %v977 = vpop.permute.xlu0 %976
    %v979 = vmul.f32 %v960, %v977
    %v980 = vpack.c.bf16 %v979, %v979
    %v981 = vrot.slane %v899, 2
    %982 = vrot.lane.b32.xlu0 %v981, 64
    %v983 = vpop.permute.xlu0 %982
    %v985 = vsel %vm167, %v983, 0
    %987 = vmatprep.subr.bf16.mxu0 0
    %988 = vmatpush1.bf16.msra.mxu0 0
    %989 = vmatprep.subr.bf16.mxu0 0
    %990 = vmatpush1.bf16.msra.mxu0 0
    %991 = vmatprep.subr.bf16.mxu0 0
    %992 = vmatpush1.bf16.msra.mxu0 0
    %993 = vmatprep.subr.bf16.mxu0 0
    %994 = vmatpush1.bf16.msra.mxu0 0
    %995 = vmatprep.subr.bf16.mxu0 0
    %996 = vmatpush1.bf16.msra.mxu0 0
    %997 = vmatprep.subr.bf16.mxu0 0
    %998 = vmatpush1.bf16.msra.mxu0 0
    %999 = vmatprep.subr.bf16.mxu0 0
    %1000 = vmatpush1.bf16.msra.mxu0 %v164
    %1001 = vmatprep.subr.bf16.mxu0 0
    %1002 = vmatpush1.bf16.msra.mxu0 %v163
    %1003 = vmatprep.subr.bf16.mxu0 0
    %1004 = vmatpush2.bf16.msra.mxu0 0
    %1005 = vmatprep.subr.bf16.mxu0 0
    %1006 = vmatpush2.bf16.msra.mxu0 0
    %1007 = vmatprep.subr.bf16.mxu0 0
    %1008 = vmatpush2.bf16.msra.mxu0 0
    %1009 = vmatprep.subr.bf16.mxu0 0
    %1010 = vmatpush2.bf16.msra.mxu0 0
    %1011 = vmatprep.subr.bf16.mxu0 0
    %1012 = vmatpush2.bf16.msra.mxu0 0
    %1013 = vmatprep.subr.bf16.mxu0 0
    %1014 = vmatpush2.bf16.msra.mxu0 0
    %1015 = vmatprep.subr.bf16.mxu0 0
    %1016 = vmatpush2.bf16.msra.mxu0 0
    %1017 = vmatprep.subr.bf16.mxu0 0
    %1018 = vmatpush2.bf16.msra.mxu0 0
    %1019 = vmatprep.mubr.bf16.mxu0 0
    %1020 = vmatmul.mubr.bf16.gmra.mxu0 %v985
    %v1021 = vpop.f32.mrf.mxu0
    %v1022 = vadd.f32 0.0, %v1021
    %v1023 = vpop.f32.mrf.mxu0
    %v1024 = vpop.f32.mrf.mxu0
    %v1025 = vpop.f32.mrf.mxu0
    %1026 = vdwg.mxu0
    %v1028 = vrot.slane %v1022, 3
    %v1030 = vadd.f32 %v150, %v1028
    %v1031 = vxor.u32 %v1030, 2147483648
    %v1032 = vmul.f32 %v1031, 1.442695
    %v1033 = vpow.pop %v1032
    %v1034 = vadd.f32 %v1033, 1.0
    %v1035 = vrcp.pop %v1034
    %v1036 = vmul.f32 1.0, %v1035
    %v1037 = vmul.f32 %v1036, 2.0
    %v1038 = vsub.f32 %v1037, 1.0
    %v1040 = vrot.slane %v892, 7
    %v1042 = vmul.f32 %v1036, %v1040
    %1044 = vrot.lane.b32.xlu0 %v1038, 32
    %v1045 = vpop.permute.xlu0 %1044
    %v1047 = vmul.f32 %v1036, %v1045
    %1049 = vrot.lane.b32.xlu0 %v1047, 32
    %v1050 = vpop.permute.xlu0 %1049
    %v1052 = vadd.f32 %v1042, %v1050
    %v1053 = vtanh.pop %v1052
    %1055 = vrot.lane.b32.xlu0 %v1053, 32
    %v1056 = vpop.permute.xlu0 %1055
    %v1058 = vmul.f32 %v1036, %v1056
    %v1059 = vpack.c.bf16 %v1058, %v1058
    %1061 = vrot.lane.b32.xlu0 %v1059, 64
    %v1062 = vpop.permute.xlu0 %1061
    %v1064 = vshll.u32 %v980, 16
    %v1066 = vrot.slane %v1064, 6
    %1067 = vrot.lane.b32.xlu0 %v1066, 96
    %v1068 = vpop.permute.xlu0 %1067
    %v1071 = vsel %vm167, %v1062, %v1068
    %v1072 = vshrl.u32 %v1071, 16
    %v1074 = vrot.slane %v1072, 2
    %v1076 = vsel %vm267, %v1074, 0
    %1078 = vmatprep.subr.bf16.mxu0 0
    %1079 = vmatpush1.bf16.msra.mxu0 0
    %1080 = vmatprep.subr.bf16.mxu0 0
    %1081 = vmatpush1.bf16.msra.mxu0 0
    %1082 = vmatprep.subr.bf16.mxu0 0
    %1083 = vmatpush1.bf16.msra.mxu0 0
    %1084 = vmatprep.subr.bf16.mxu0 0
    %1085 = vmatpush1.bf16.msra.mxu0 0
    %1086 = vmatprep.subr.bf16.mxu0 0
    %1087 = vmatpush1.bf16.msra.mxu0 %v262
    %1088 = vmatprep.subr.bf16.mxu0 0
    %1089 = vmatpush1.bf16.msra.mxu0 %v261
    %1090 = vmatprep.subr.bf16.mxu0 0
    %1091 = vmatpush1.bf16.msra.mxu0 %v260
    %1092 = vmatprep.subr.bf16.mxu0 0
    %1093 = vmatpush1.bf16.msra.mxu0 %v259
    %1094 = vmatprep.subr.bf16.mxu0 0
    %1095 = vmatpush2.bf16.msra.mxu0 0
    %1096 = vmatprep.subr.bf16.mxu0 0
    %1097 = vmatpush2.bf16.msra.mxu0 0
    %1098 = vmatprep.subr.bf16.mxu0 0
    %1099 = vmatpush2.bf16.msra.mxu0 0
    %1100 = vmatprep.subr.bf16.mxu0 0
    %1101 = vmatpush2.bf16.msra.mxu0 0
    %1102 = vmatprep.subr.bf16.mxu0 0
    %1103 = vmatpush2.bf16.msra.mxu0 0
    %1104 = vmatprep.subr.bf16.mxu0 0
    %1105 = vmatpush2.bf16.msra.mxu0 0
    %1106 = vmatprep.subr.bf16.mxu0 0
    %1107 = vmatpush2.bf16.msra.mxu0 0
    %1108 = vmatprep.subr.bf16.mxu0 0
    %1109 = vmatpush2.bf16.msra.mxu0 0
    %1110 = vmatprep.mubr.bf16.mxu0 0
    %1111 = vmatmul.mubr.bf16.gmra.mxu0 %v1076
    %v1112 = vpop.f32.mrf.mxu0
    %v1113 = vadd.f32 %v94, %v1112
    %v1114 = vpop.f32.mrf.mxu0
    %v1115 = vpop.f32.mrf.mxu0
    %v1116 = vpop.f32.mrf.mxu0
    %1117 = vdwg.mxu0
    %v1118 = vxor.u32 %v1113, 2147483648
    %v1119 = vmul.f32 %v1118, 1.442695
    %v1120 = vpow.pop %v1119
    %v1121 = vadd.f32 %v1120, 1.0
    %v1122 = vrcp.pop %v1121
    %v1123 = vmul.f32 1.0, %v1122
    %v1124 = vmul.f32 %v1123, 2.0
    %v1125 = vsub.f32 %v1124, 1.0
    %v1126 = vmul.f32 %v1123, %v973
    %1128 = vrot.lane.b32.xlu0 %v1125, 32
    %v1129 = vpop.permute.xlu0 %1128
    %v1131 = vmul.f32 %v1123, %v1129
    %1133 = vrot.lane.b32.xlu0 %v1131, 32
    %v1134 = vpop.permute.xlu0 %1133
    %v1136 = vadd.f32 %v1126, %v1134
    %v1137 = vtanh.pop %v1136
    %1139 = vrot.lane.b32.xlu0 %v1137, 32
    %v1140 = vpop.permute.xlu0 %1139
    %v1142 = vmul.f32 %v1123, %v1140
    %v1143 = vpack.c.bf16 %v1142, %v1142
    %v1145 = vshrl.u32 %v1059, 16
    %v1147 = vrot.slane %v1145, 2
    %1148 = vrot.lane.b32.xlu0 %v1147, 64
    %v1149 = vpop.permute.xlu0 %1148
    %v1151 = vsel %vm167, %v1149, 0
    %1153 = vmatprep.subr.bf16.mxu0 0
    %1154 = vmatpush1.bf16.msra.mxu0 0
    %1155 = vmatprep.subr.bf16.mxu0 0
    %1156 = vmatpush1.bf16.msra.mxu0 0
    %1157 = vmatprep.subr.bf16.mxu0 0
    %1158 = vmatpush1.bf16.msra.mxu0 0
    %1159 = vmatprep.subr.bf16.mxu0 0
    %1160 = vmatpush1.bf16.msra.mxu0 0
    %1161 = vmatprep.subr.bf16.mxu0 0
    %1162 = vmatpush1.bf16.msra.mxu0 0
    %1163 = vmatprep.subr.bf16.mxu0 0
    %1164 = vmatpush1.bf16.msra.mxu0 0
    %1165 = vmatprep.subr.bf16.mxu0 0
    %1166 = vmatpush1.bf16.msra.mxu0 %v164
    %1167 = vmatprep.subr.bf16.mxu0 0
    %1168 = vmatpush1.bf16.msra.mxu0 %v163
    %1169 = vmatprep.subr.bf16.mxu0 0
    %1170 = vmatpush2.bf16.msra.mxu0 0
    %1171 = vmatprep.subr.bf16.mxu0 0
    %1172 = vmatpush2.bf16.msra.mxu0 0
    %1173 = vmatprep.subr.bf16.mxu0 0
    %1174 = vmatpush2.bf16.msra.mxu0 0
    %1175 = vmatprep.subr.bf16.mxu0 0
    %1176 = vmatpush2.bf16.msra.mxu0 0
    %1177 = vmatprep.subr.bf16.mxu0 0
    %1178 = vmatpush2.bf16.msra.mxu0 0
    %1179 = vmatprep.subr.bf16.mxu0 0
    %1180 = vmatpush2.bf16.msra.mxu0 0
    %1181 = vmatprep.subr.bf16.mxu0 0
    %1182 = vmatpush2.bf16.msra.mxu0 0
    %1183 = vmatprep.subr.bf16.mxu0 0
    %1184 = vmatpush2.bf16.msra.mxu0 0
    %1185 = vmatprep.mubr.bf16.mxu0 0
    %1186 = vmatmul.mubr.bf16.gmra.mxu0 %v1151
    %v1187 = vpop.f32.mrf.mxu0
    %v1188 = vadd.f32 0.0, %v1187
    %v1189 = vpop.f32.mrf.mxu0
    %v1190 = vpop.f32.mrf.mxu0
    %v1191 = vpop.f32.mrf.mxu0
    %1192 = vdwg.mxu0
    %v1194 = vrot.slane %v1188, 2
    %v1196 = vadd.f32 %v150, %v1194
    %v1197 = vxor.u32 %v1196, 2147483648
    %v1198 = vmul.f32 %v1197, 1.442695
    %v1199 = vpow.pop %v1198
    %v1200 = vadd.f32 %v1199, 1.0
    %v1201 = vrcp.pop %v1200
    %v1202 = vmul.f32 1.0, %v1201
    %v1203 = vmul.f32 %v1202, 2.0
    %v1204 = vsub.f32 %v1203, 1.0
    %v1206 = vrot.slane %v1052, 7
    %v1208 = vmul.f32 %v1202, %v1206
    %1210 = vrot.lane.b32.xlu0 %v1204, 32
    %v1211 = vpop.permute.xlu0 %1210
    %v1213 = vmul.f32 %v1202, %v1211
    %1215 = vrot.lane.b32.xlu0 %v1213, 32
    %v1216 = vpop.permute.xlu0 %1215
    %v1218 = vadd.f32 %v1208, %v1216
    %v1219 = vtanh.pop %v1218
    %1221 = vrot.lane.b32.xlu0 %v1219, 32
    %v1222 = vpop.permute.xlu0 %1221
    %v1224 = vmul.f32 %v1202, %v1222
    %v1225 = vpack.c.bf16 %v1224, %v1224
    %1227 = vrot.lane.b32.xlu0 %v1225, 64
    %v1228 = vpop.permute.xlu0 %1227
    %v1230 = vrot.slane %v1143, 5
    %1231 = vrot.lane.b32.xlu0 %v1230, 96
    %v1232 = vpop.permute.xlu0 %1231
    %v1235 = vsel %vm167, %v1228, %v1232
    %v1237 = vrot.slane %v1235, 3
    %v1239 = vsel %vm267, %v1237, 0
    %1241 = vmatprep.subr.bf16.mxu0 0
    %1242 = vmatpush1.bf16.msra.mxu0 0
    %1243 = vmatprep.subr.bf16.mxu0 0
    %1244 = vmatpush1.bf16.msra.mxu0 0
    %1245 = vmatprep.subr.bf16.mxu0 0
    %1246 = vmatpush1.bf16.msra.mxu0 0
    %1247 = vmatprep.subr.bf16.mxu0 0
    %1248 = vmatpush1.bf16.msra.mxu0 0
    %1249 = vmatprep.subr.bf16.mxu0 0
    %1250 = vmatpush1.bf16.msra.mxu0 %v262
    %1251 = vmatprep.subr.bf16.mxu0 0
    %1252 = vmatpush1.bf16.msra.mxu0 %v261
    %1253 = vmatprep.subr.bf16.mxu0 0
    %1254 = vmatpush1.bf16.msra.mxu0 %v260
    %1255 = vmatprep.subr.bf16.mxu0 0
    %1256 = vmatpush1.bf16.msra.mxu0 %v259
    %1257 = vmatprep.subr.bf16.mxu0 0
    %1258 = vmatpush2.bf16.msra.mxu0 0
    %1259 = vmatprep.subr.bf16.mxu0 0
    %1260 = vmatpush2.bf16.msra.mxu0 0
    %1261 = vmatprep.subr.bf16.mxu0 0
    %1262 = vmatpush2.bf16.msra.mxu0 0
    %1263 = vmatprep.subr.bf16.mxu0 0
    %1264 = vmatpush2.bf16.msra.mxu0 0
    %1265 = vmatprep.subr.bf16.mxu0 0
    %1266 = vmatpush2.bf16.msra.mxu0 0
    %1267 = vmatprep.subr.bf16.mxu0 0
    %1268 = vmatpush2.bf16.msra.mxu0 0
    %1269 = vmatprep.subr.bf16.mxu0 0
    %1270 = vmatpush2.bf16.msra.mxu0 0
    %1271 = vmatprep.subr.bf16.mxu0 0
    %1272 = vmatpush2.bf16.msra.mxu0 0
    %1273 = vmatprep.mubr.bf16.mxu0 0
    %1274 = vmatmul.mubr.bf16.gmra.mxu0 %v1239
    %v1275 = vpop.f32.mrf.mxu0
    %v1276 = vadd.f32 %v94, %v1275
    %v1277 = vpop.f32.mrf.mxu0
    %v1278 = vpop.f32.mrf.mxu0
    %v1279 = vpop.f32.mrf.mxu0
    %1280 = vdwg.mxu0
    %v1281 = vxor.u32 %v1276, 2147483648
    %v1282 = vmul.f32 %v1281, 1.442695
    %v1283 = vpow.pop %v1282
    %v1284 = vadd.f32 %v1283, 1.0
    %v1285 = vrcp.pop %v1284
    %v1286 = vmul.f32 1.0, %v1285
    %v1287 = vmul.f32 %v1286, 2.0
    %v1288 = vsub.f32 %v1287, 1.0
    %v1289 = vmul.f32 %v1286, %v1136
    %1291 = vrot.lane.b32.xlu0 %v1288, 32
    %v1292 = vpop.permute.xlu0 %1291
    %v1294 = vmul.f32 %v1286, %v1292
    %1296 = vrot.lane.b32.xlu0 %v1294, 32
    %v1297 = vpop.permute.xlu0 %1296
    %v1299 = vadd.f32 %v1289, %v1297
    %v1300 = vtanh.pop %v1299
    %1302 = vrot.lane.b32.xlu0 %v1300, 32
    %v1303 = vpop.permute.xlu0 %1302
    %v1305 = vmul.f32 %v1286, %v1303
    %v1306 = vpack.c.bf16 %v1305, %v1305
    %v1307 = vrot.slane %v1225, 3
    %1308 = vrot.lane.b32.xlu0 %v1307, 64
    %v1309 = vpop.permute.xlu0 %1308
    %v1311 = vsel %vm167, %v1309, 0
    %1313 = vmatprep.subr.bf16.mxu0 0
    %1314 = vmatpush1.bf16.msra.mxu0 0
    %1315 = vmatprep.subr.bf16.mxu0 0
    %1316 = vmatpush1.bf16.msra.mxu0 0
    %1317 = vmatprep.subr.bf16.mxu0 0
    %1318 = vmatpush1.bf16.msra.mxu0 0
    %1319 = vmatprep.subr.bf16.mxu0 0
    %1320 = vmatpush1.bf16.msra.mxu0 0
    %1321 = vmatprep.subr.bf16.mxu0 0
    %1322 = vmatpush1.bf16.msra.mxu0 0
    %1323 = vmatprep.subr.bf16.mxu0 0
    %1324 = vmatpush1.bf16.msra.mxu0 0
    %1325 = vmatprep.subr.bf16.mxu0 0
    %1326 = vmatpush1.bf16.msra.mxu0 %v164
    %1327 = vmatprep.subr.bf16.mxu0 0
    %1328 = vmatpush1.bf16.msra.mxu0 %v163
    %1329 = vmatprep.subr.bf16.mxu0 0
    %1330 = vmatpush2.bf16.msra.mxu0 0
    %1331 = vmatprep.subr.bf16.mxu0 0
    %1332 = vmatpush2.bf16.msra.mxu0 0
    %1333 = vmatprep.subr.bf16.mxu0 0
    %1334 = vmatpush2.bf16.msra.mxu0 0
    %1335 = vmatprep.subr.bf16.mxu0 0
    %1336 = vmatpush2.bf16.msra.mxu0 0
    %1337 = vmatprep.subr.bf16.mxu0 0
    %1338 = vmatpush2.bf16.msra.mxu0 0
    %1339 = vmatprep.subr.bf16.mxu0 0
    %1340 = vmatpush2.bf16.msra.mxu0 0
    %1341 = vmatprep.subr.bf16.mxu0 0
    %1342 = vmatpush2.bf16.msra.mxu0 0
    %1343 = vmatprep.subr.bf16.mxu0 0
    %1344 = vmatpush2.bf16.msra.mxu0 0
    %1345 = vmatprep.mubr.bf16.mxu0 0
    %1346 = vmatmul.mubr.bf16.gmra.mxu0 %v1311
    %v1347 = vpop.f32.mrf.mxu0
    %v1348 = vadd.f32 0.0, %v1347
    %v1349 = vpop.f32.mrf.mxu0
    %v1350 = vpop.f32.mrf.mxu0
    %v1351 = vpop.f32.mrf.mxu0
    %1352 = vdwg.mxu0
    %v1354 = vrot.slane %v1348, 1
    %v1356 = vadd.f32 %v150, %v1354
    %v1357 = vxor.u32 %v1356, 2147483648
    %v1358 = vmul.f32 %v1357, 1.442695
    %v1359 = vpow.pop %v1358
    %v1360 = vadd.f32 %v1359, 1.0
    %v1361 = vrcp.pop %v1360
    %v1362 = vmul.f32 1.0, %v1361
    %v1363 = vmul.f32 %v1362, 2.0
    %v1364 = vsub.f32 %v1363, 1.0
    %v1366 = vrot.slane %v1218, 7
    %v1368 = vmul.f32 %v1362, %v1366
    %1370 = vrot.lane.b32.xlu0 %v1364, 32
    %v1371 = vpop.permute.xlu0 %1370
    %v1373 = vmul.f32 %v1362, %v1371
    %1375 = vrot.lane.b32.xlu0 %v1373, 32
    %v1376 = vpop.permute.xlu0 %1375
    %v1378 = vadd.f32 %v1368, %v1376
    %v1379 = vtanh.pop %v1378
    %1381 = vrot.lane.b32.xlu0 %v1379, 32
    %v1382 = vpop.permute.xlu0 %1381
    %v1384 = vmul.f32 %v1362, %v1382
    %v1385 = vpack.c.bf16 %v1384, %v1384
    %1387 = vrot.lane.b32.xlu0 %v1385, 64
    %v1388 = vpop.permute.xlu0 %1387
    %v1390 = vshll.u32 %v1306, 16
    %v1392 = vrot.slane %v1390, 5
    %1393 = vrot.lane.b32.xlu0 %v1392, 96
    %v1394 = vpop.permute.xlu0 %1393
    %v1397 = vsel %vm167, %v1388, %v1394
    %v1398 = vshrl.u32 %v1397, 16
    %v1400 = vrot.slane %v1398, 3
    %v1402 = vsel %vm267, %v1400, 0
    %1404 = vmatprep.subr.bf16.mxu0 0
    %1405 = vmatpush1.bf16.msra.mxu0 0
    %1406 = vmatprep.subr.bf16.mxu0 0
    %1407 = vmatpush1.bf16.msra.mxu0 0
    %1408 = vmatprep.subr.bf16.mxu0 0
    %1409 = vmatpush1.bf16.msra.mxu0 0
    %1410 = vmatprep.subr.bf16.mxu0 0
    %1411 = vmatpush1.bf16.msra.mxu0 0
    %1412 = vmatprep.subr.bf16.mxu0 0
    %1413 = vmatpush1.bf16.msra.mxu0 %v262
    %1414 = vmatprep.subr.bf16.mxu0 0
    %1415 = vmatpush1.bf16.msra.mxu0 %v261
    %1416 = vmatprep.subr.bf16.mxu0 0
    %1417 = vmatpush1.bf16.msra.mxu0 %v260
    %1418 = vmatprep.subr.bf16.mxu0 0
    %1419 = vmatpush1.bf16.msra.mxu0 %v259
    %1420 = vmatprep.subr.bf16.mxu0 0
    %1421 = vmatpush2.bf16.msra.mxu0 0
    %1422 = vmatprep.subr.bf16.mxu0 0
    %1423 = vmatpush2.bf16.msra.mxu0 0
    %1424 = vmatprep.subr.bf16.mxu0 0
    %1425 = vmatpush2.bf16.msra.mxu0 0
    %1426 = vmatprep.subr.bf16.mxu0 0
    %1427 = vmatpush2.bf16.msra.mxu0 0
    %1428 = vmatprep.subr.bf16.mxu0 0
    %1429 = vmatpush2.bf16.msra.mxu0 0
    %1430 = vmatprep.subr.bf16.mxu0 0
    %1431 = vmatpush2.bf16.msra.mxu0 0
    %1432 = vmatprep.subr.bf16.mxu0 0
    %1433 = vmatpush2.bf16.msra.mxu0 0
    %1434 = vmatprep.subr.bf16.mxu0 0
    %1435 = vmatpush2.bf16.msra.mxu0 0
    %1436 = vmatprep.mubr.bf16.mxu0 0
    %1437 = vmatmul.mubr.bf16.gmra.mxu0 %v1402
    %v1438 = vpop.f32.mrf.mxu0
    %v1439 = vadd.f32 %v94, %v1438
    %v1440 = vpop.f32.mrf.mxu0
    %v1441 = vpop.f32.mrf.mxu0
    %v1442 = vpop.f32.mrf.mxu0
    %1443 = vdwg.mxu0
    %v1444 = vxor.u32 %v1439, 2147483648
    %v1445 = vmul.f32 %v1444, 1.442695
    %v1446 = vpow.pop %v1445
    %v1447 = vadd.f32 %v1446, 1.0
    %v1448 = vrcp.pop %v1447
    %v1449 = vmul.f32 1.0, %v1448
    %v1450 = vmul.f32 %v1449, 2.0
    %v1451 = vsub.f32 %v1450, 1.0
    %v1452 = vmul.f32 %v1449, %v1299
    %1454 = vrot.lane.b32.xlu0 %v1451, 32
    %v1455 = vpop.permute.xlu0 %1454
    %v1457 = vmul.f32 %v1449, %v1455
    %1459 = vrot.lane.b32.xlu0 %v1457, 32
    %v1460 = vpop.permute.xlu0 %1459
    %v1462 = vadd.f32 %v1452, %v1460
    %v1463 = vtanh.pop %v1462
    %1465 = vrot.lane.b32.xlu0 %v1463, 32
    %v1466 = vpop.permute.xlu0 %1465
    %v1468 = vmul.f32 %v1449, %v1466
    %v1470 = vrot.slane %v491, 7
    %v1473 = vrot.slane %v653, 6
    %v1476 = vrot.slane %v816, 5
    %v1479 = vrot.slane %v979, 4
    %v1482 = vrot.slane %v1142, 3
    %v1485 = vrot.slane %v1305, 2
    %v1488 = vrot.slane %v1468, 1
    %vm1490 = vcmask 1040384
    %v1491 = vsel %vm1490, %v334, %v1470
    %v1492 = vsel %vm111, %v1491, %v1473
    %vm1493 = vcmask 1042432
    %v1494 = vsel %vm1493, %v1492, %v1476
    %vm1495 = vcmask 1043456
    %v1496 = vsel %vm1495, %v1494, %v1479
    %vm1497 = vcmask 1044480
    %v1498 = vsel %vm1497, %v1496, %v1482
    %vm1499 = vcmask 1045504
    %v1500 = vsel %vm1499, %v1498, %v1485
    %vm1501 = vcmask 1046528
    %v1502 = vsel %vm1501, %v1500, %v1488
    %v1503 = vpack.c.bf16 %v1502, %v1502
    %v1505 = vlaneseq
    %v1506 = vshrl.u32 %v1505, 7
    %v1507 = vsub.s32 0, %v1506
    %v1508 = vrot.slane %v99, %v1507
    %1511 = vrot.lane.b32.xlu0 %v1503, 64
    %v1512 = vpop.permute.xlu0 %1511
    %v1517 = vunpack.c.l.b16 %v95
    %v1518 = vunpack.c.l.b16 %v96
    %v1519 = vunpack.c.l.b16 %v97
    %v1520 = vunpack.c.l.b16 %v98
    %v1521 = vpack.c.b16 %v1518, %v1517
    %v1522 = vpack.c.b16 %v1520, %v1519
    %v1526 = vsel %vm167, %v1512, 0
    %1528 = vmatprep.subr.bf16.mxu0 0
    %1529 = vmatpush1.bf16.msra.mxu0 0
    %1530 = vmatprep.subr.bf16.mxu0 0
    %1531 = vmatpush1.bf16.msra.mxu0 0
    %1532 = vmatprep.subr.bf16.mxu0 0
    %1533 = vmatpush1.bf16.msra.mxu0 0
    %1534 = vmatprep.subr.bf16.mxu0 0
    %1535 = vmatpush1.bf16.msra.mxu0 0
    %1536 = vmatprep.subr.bf16.mxu0 0
    %1537 = vmatpush1.bf16.msra.mxu0 0
    %1538 = vmatprep.subr.bf16.mxu0 0
    %1539 = vmatpush1.bf16.msra.mxu0 0
    %1540 = vmatprep.subr.bf16.mxu0 0
    %1541 = vmatpush1.bf16.msra.mxu0 %v1522
    %1542 = vmatprep.subr.bf16.mxu0 0
    %1543 = vmatpush1.bf16.msra.mxu0 %v1521
    %1544 = vmatprep.subr.bf16.mxu0 0
    %1545 = vmatpush2.bf16.msra.mxu0 0
    %1546 = vmatprep.subr.bf16.mxu0 0
    %1547 = vmatpush2.bf16.msra.mxu0 0
    %1548 = vmatprep.subr.bf16.mxu0 0
    %1549 = vmatpush2.bf16.msra.mxu0 0
    %1550 = vmatprep.subr.bf16.mxu0 0
    %1551 = vmatpush2.bf16.msra.mxu0 0
    %1552 = vmatprep.subr.bf16.mxu0 0
    %1553 = vmatpush2.bf16.msra.mxu0 0
    %1554 = vmatprep.subr.bf16.mxu0 0
    %1555 = vmatpush2.bf16.msra.mxu0 0
    %1556 = vmatprep.subr.bf16.mxu0 0
    %1557 = vmatpush2.bf16.msra.mxu0 0
    %1558 = vmatprep.subr.bf16.mxu0 0
    %1559 = vmatpush2.bf16.msra.mxu0 0
    %1560 = vmatprep.mubr.bf16.mxu0 0
    %1561 = vmatmul.mubr.bf16.gmra.mxu0 %v1526
    %v1562 = vpop.f32.mrf.mxu0
    %v1563 = vadd.f32 %v1508, %v1562
    %v1564 = vpop.f32.mrf.mxu0
    %v1565 = vpop.f32.mrf.mxu0
    %v1566 = vpop.f32.mrf.mxu0
    %1567 = vdwg.mxu0
    %vm1568 = vcmask 64512
    %1569 = vst.msk [vmem:[#allocation10] sm:$0xff] %vm1568, %v1563
    // Predicated region
    $region50: #{tpu_custom_call.1} parent=1 // pred_check
      _
    $region51: #{tpu_custom_call.1} parent=1 // pred_check_branch
      %1571 = sbr.rel (0) target = $region53
    $region52: #{tpu_custom_call.1} parent=1 // pred_region
      %s1573 = ssub.s32 128, 128
      %1574 = vsyncadd [#allocation4], %s1573
      %s1576 = sshll.u32 [#allocation10], 4
      %s1577 = int_to_ptr.vmem [resolvable:$true] %s1576
      %1579 = dma.vmem_to_hbm [thread:$0]  %s1577, 128, %s8, [#allocation4]
    $region53: #{tpu_custom_call.1} parent=1 // pred_fallthru
      _
    // Predicated region
    $region54: #{tpu_custom_call.1} parent=1 // pred_check
      _
    $region55: #{tpu_custom_call.1} parent=1 // pred_check_branch
      %1581 = sbr.rel (0) target = $region57
    $region56: #{tpu_custom_call.1} parent=1 // pred_region
      %1582 = dma.done [#allocation4], 128
    $region57: #{tpu_custom_call.1} parent=1 // pred_fallthru
      _
    %1583 = vsyncpa [#allocation3], 1
    %1584 = vsyncpa [#allocation6], 1
    %1585 = vsyncpa [#allocation9], 1
    %1586 = vsyncpa [#allocation4], 1

</llo_original>
